<compile_context>
chip_gen: v5e
topology: v5e:2x2
jax: 0.10.0
libtpu: 0.0.40
codegen_flags: <defaults>
</compile_context>

<pallas_src>
import functools

import jax
import jax.numpy as jnp
from jax.experimental import pallas as pl
from jax.experimental.pallas import tpu as pltpu


def _round_up(x, m):
    return (x + m - 1) // m * m


def _vmem_limit_bytes():
    """Per-generation VMEM budget: ~3/4 of physical, capped at 100 MiB."""
    try:
        cap = int(pltpu.get_tpu_info().vmem_capacity_bytes)
    except Exception:
        cap = 64 * 1024 * 1024
    return int(min(100 * 1024 * 1024, cap * 3 // 4))


def _pick_row_tile(hout, wout, tc, budget_bytes):
    """Largest divisor of Hout whose (th, Wout, tc) bf16 block fits the budget."""
    th = 1
    for cand in range(1, hout + 1):
        if hout % cand == 0 and cand * wout * tc * 2 <= budget_bytes:
            th = cand
    return th


# ----------------------------------------------------------------------------
# Pallas kernels
# ----------------------------------------------------------------------------
def _conv_rows_kernel(x_ref, w_ref, b_ref, o_ref, acc_ref, *, k, stride, wout, apply_relu):
    """One padded input row -> one output row, accumulated over the k vertical taps.

    Grid = (N, Hout, k); dy = program_id(2) is the reduction axis.
      x_ref : (1, 1, Wpad, Cin)   bf16  padded input row  ho*stride + dy
      w_ref : (k, k, Cin, Coutp)  bf16  full weight, resident in VMEM (constant index_map)
      b_ref : (1, Coutp)          f32
      o_ref : (1, 1, Wout, Coutp)
      acc_ref: (Wout, Coutp)      f32 scratch accumulator
    """
    dy = pl.program_id(2)

    @pl.when(dy == 0)
    def _():
        acc_ref[...] = jnp.zeros_like(acc_ref)

    row = x_ref[0, 0]                      # (Wpad, Cin) bf16
    cin = row.shape[1]
    acc = acc_ref[...]
    for dx in range(k):                    # static unroll: k shifted matmuls on the MXU
        if stride == 1:
            a = row[dx:dx + wout]
        else:
            a = jax.lax.slice(row, (dx, 0),
                              (dx + (wout - 1) * stride + 1, cin), (stride, 1))
        acc = acc + jnp.dot(a, w_ref[dy, dx], preferred_element_type=jnp.float32)
    acc_ref[...] = acc

    @pl.when(dy == k - 1)
    def _():
        y = acc_ref[...] + b_ref[...]
        if apply_relu:
            y = jnp.maximum(y, 0.0)
        o_ref[0, 0] = y.astype(o_ref.dtype)


def _in_stats_kernel(y_ref, s_ref):
    """Accumulate per-(n, channel) sum and sum-sq over spatial row tiles.

    Grid = (N, Cp//tc, Hout//th); spatial tile axis is last (reduction).
      y_ref : (1, th, Wout, tc) bf16
      s_ref : (1, 2, tc)        f32  output accumulator ([...,0,:]=sum, [...,1,:]=sum sq)
    """
    si = pl.program_id(2)

    @pl.when(si == 0)
    def _():
        s_ref[...] = jnp.zeros_like(s_ref)

    y = y_ref[0].astype(jnp.float32)                       # (th, Wout, tc)
    s1 = jnp.sum(jnp.sum(y, axis=0), axis=0, keepdims=True)        # (1, tc)
    s2 = jnp.sum(jnp.sum(y * y, axis=0), axis=0, keepdims=True)    # (1, tc)
    # NOTE: single-pass E[x^2]-mean^2 stats (input is bf16 anyway, f32 accumulation).
    s_ref[0, 0:1, :] += s1
    s_ref[0, 1:2, :] += s2


def _in_apply_kernel(y_ref, sc_ref, sh_ref, o_ref, *, apply_relu):
    """y * scale + shift (+ ReLU), spatially and channel tiled.

      y_ref  : (1, th, Wout, tc) bf16
      sc_ref : (1, 1, tc)        f32   gamma * rstd
      sh_ref : (1, 1, tc)        f32   beta - mean * gamma * rstd
      o_ref  : (1, th, Wout, tc) f32
    """
    y = y_ref[0].astype(jnp.float32)       # (th, Wout, tc)
    sc = sc_ref[0][None]                   # (1, 1, tc)
    sh = sh_ref[0][None]
    out = y * sc + sh
    if apply_relu:
        out = jnp.maximum(out, 0.0)
    o_ref[0] = out.astype(o_ref.dtype)


# ----------------------------------------------------------------------------
# Pallas wrappers
# ----------------------------------------------------------------------------
def _pallas_conv(xp, w4, b_row, *, k, stride, hout, wout, coutp, out_dtype,
                 apply_relu, vmem_limit):
    n, hpad, wpad, cin = xp.shape
    return pl.pallas_call(
        functools.partial(_conv_rows_kernel, k=k, stride=stride, wout=wout,
                          apply_relu=apply_relu),
        out_shape=jax.ShapeDtypeStruct((n, hout, wout, coutp), out_dtype),
        grid_spec=pltpu.PrefetchScalarGridSpec(
            num_scalar_prefetch=0,
            grid=(n, hout, k),
            in_specs=[
                pl.BlockSpec((1, 1, wpad, cin),
                             lambda nn, ho, dy: (nn, ho * stride + dy, 0, 0)),
                pl.BlockSpec((k, k, cin, coutp), lambda nn, ho, dy: (0, 0, 0, 0)),
                pl.BlockSpec((1, coutp), lambda nn, ho, dy: (0, 0)),
            ],
            out_specs=pl.BlockSpec((1, 1, wout, coutp),
                                   lambda nn, ho, dy: (nn, ho, 0, 0)),
            scratch_shapes=[pltpu.VMEM((wout, coutp), jnp.float32)],
        ),
        compiler_params=pltpu.CompilerParams(
            dimension_semantics=("parallel", "parallel", "arbitrary"),
            vmem_limit_bytes=vmem_limit,
        ),
    )(xp, w4, b_row)


def _pallas_in_stats(y, *, tc, th, vmem_limit):
    n, hout, wout, cp = y.shape
    return pl.pallas_call(
        _in_stats_kernel,
        out_shape=jax.ShapeDtypeStruct((n, 2, cp), jnp.float32),
        grid_spec=pltpu.PrefetchScalarGridSpec(
            num_scalar_prefetch=0,
            grid=(n, cp // tc, hout // th),
            in_specs=[pl.BlockSpec((1, th, wout, tc), lambda nn, c, s: (nn, s, 0, c))],
            out_specs=pl.BlockSpec((1, 2, tc), lambda nn, c, s: (nn, 0, c)),
        ),
        compiler_params=pltpu.CompilerParams(
            dimension_semantics=("parallel", "parallel", "arbitrary"),
            vmem_limit_bytes=vmem_limit,
        ),
    )(y)


def _pallas_in_apply(y, scale, shift, *, tc, th, apply_relu, vmem_limit):
    n, hout, wout, cp = y.shape
    return pl.pallas_call(
        functools.partial(_in_apply_kernel, apply_relu=apply_relu),
        out_shape=jax.ShapeDtypeStruct((n, hout, wout, cp), jnp.float32),
        grid_spec=pltpu.PrefetchScalarGridSpec(
            num_scalar_prefetch=0,
            grid=(n, cp // tc, hout // th),
            in_specs=[
                pl.BlockSpec((1, th, wout, tc), lambda nn, c, s: (nn, s, 0, c)),
                pl.BlockSpec((1, 1, tc), lambda nn, c, s: (nn, 0, c)),
                pl.BlockSpec((1, 1, tc), lambda nn, c, s: (nn, 0, c)),
            ],
            out_specs=pl.BlockSpec((1, th, wout, tc), lambda nn, c, s: (nn, s, 0, c)),
        ),
        compiler_params=pltpu.CompilerParams(
            dimension_semantics=("parallel", "parallel", "parallel"),
            vmem_limit_bytes=vmem_limit,
        ),
    )(y, scale, shift)


# ----------------------------------------------------------------------------
# ConvBlock forward
# ----------------------------------------------------------------------------
def conv_block_forward(
    x,        # NCHW float32
    conv_w,   # (Cout, Cin, k, k)
    conv_b,   # (Cout,)
    gamma,    # (Cout,) or None
    beta,     # (Cout,) or None
    *,
    kernel_size,
    stride=1,
    upsample=False,
    normalize=True,
    relu=True,
    eps=1e-5,
):
    N, Cin, H, W = x.shape
    Cout = conv_w.shape[0]
    k = kernel_size
    p = k // 2

    Hu, Wu = (2 * H, 2 * W) if upsample else (H, W)
    assert Hu > p and Wu > p, "reflection padding requires spatial dims > kernel_size // 2"
    Hpad, Wpad = Hu + 2 * p, Wu + 2 * p
    Hout = (Hpad - k) // stride + 1
    Wout = (Wpad - k) // stride + 1

    vmem_limit = _vmem_limit_bytes()

    # --- fused 2x-nearest-upsample + reflection-pad gather (no k^2 im2col) --------------
    def pad_index(out_len, in_len):
        q = jnp.arange(out_len) - p
        q = jnp.where(q < 0, -q, q)                        # reflect (no edge repeat)
        q = jnp.where(q >= in_len, 2 * (in_len - 1) - q, q)
        return q // 2 if upsample else q                   # nearest: src = dst // 2

    h_idx = pad_index(Hpad, Hu)
    w_idx = pad_index(Wpad, Wu)
    x_nhwc = x.transpose(0, 2, 3, 1).astype(jnp.bfloat16)
    xp = x_nhwc[:, h_idx][:, :, w_idx]                     # (N, Hpad, Wpad, Cin) bf16

    # --- weights: (dy, dx, cin, cout_padded), fully resident in VMEM --------------------
    Coutp = _round_up(Cout, 128)
    w4 = jnp.pad(conv_w.transpose(2, 3, 1, 0),
                 ((0, 0), (0, 0), (0, 0), (0, Coutp - Cout))).astype(jnp.bfloat16)
    b_row = jnp.pad(conv_b.astype(jnp.float32), (0, Coutp - Cout)).reshape(1, Coutp)

    out_bytes = 2 if normalize else 4
    conv_vmem = (2 * k * k * Cin * Coutp * 2      # double-buffered resident weight
                 + 2 * Wpad * Cin * 2             # double-buffered input row
                 + 2 * Wout * Coutp * out_bytes   # double-buffered output row
                 + Wout * Coutp * 4)              # f32 accumulator
    # TODO(synk): tile Cout (and stream weight slices) if a single layer's resident
    # weight + row buffers ever exceed the VMEM budget.
    assert conv_vmem < vmem_limit, "ConvBlock layer too large for resident-weight kernel"

    fuse_relu = relu and not normalize
    conv_dtype = jnp.bfloat16 if normalize else jnp.float32
    y = _pallas_conv(xp, w4, b_row, k=k, stride=stride, hout=Hout, wout=Wout,
                     coutp=Coutp, out_dtype=conv_dtype, apply_relu=fuse_relu,
                     vmem_limit=vmem_limit)       # (N, Hout, Wout, Coutp)

    # --- InstanceNorm2d(affine) + ReLU: spatially tiled stats + apply --------------------
    if normalize:
        tc = 256 if Coutp % 256 == 0 else 128
        th = _pick_row_tile(Hout, Wout, tc, max(vmem_limit // 16, 64 * 1024))
        stats = _pallas_in_stats(y, tc=tc, th=th, vmem_limit=vmem_limit)   # (N, 2, Coutp)

        cnt = float(Hout * Wout)
        mean = stats[:, 0, :] / cnt
        var = jnp.maximum(stats[:, 1, :] / cnt - mean * mean, 0.0)
        rstd = jax.lax.rsqrt(var + eps)
        g = jnp.pad(gamma.astype(jnp.float32), (0, Coutp - Cout), constant_values=1.0)
        be = jnp.pad(beta.astype(jnp.float32), (0, Coutp - Cout))
        scale = (g[None, :] * rstd).reshape(N, 1, Coutp)
        shift = (be[None, :] - mean * g[None, :] * rstd).reshape(N, 1, Coutp)

        y = _pallas_in_apply(y, scale, shift, tc=tc, th=th, apply_relu=relu,
                             vmem_limit=vmem_limit)

    # Network-boundary layout change back to NCHW.
    # TODO(synk): when chaining ConvBlocks, keep the NHWC (lane-dense) layout and skip this.
    return y[..., :Cout].transpose(0, 3, 1, 2).astype(jnp.float32)


# ----------------------------------------------------------------------------
# Deterministic parameter init, pure-JAX reference, demo
# ----------------------------------------------------------------------------
def init_conv_block_params(key, in_channels, out_channels, kernel_size):
    k_w, k_b = jax.random.split(key)
    fan_in = in_channels * kernel_size * kernel_size
    bound = 1.0 / jnp.sqrt(fan_in)
    conv_w = jax.random.uniform(
        k_w, (out_channels, in_channels, kernel_size, kernel_size),
        minval=-bound, maxval=bound, dtype=jnp.float32)
    conv_b = jax.random.uniform(
        k_b, (out_channels,), minval=-bound, maxval=bound, dtype=jnp.float32)
    gamma = jnp.ones((out_channels,), jnp.float32)
    beta = jnp.zeros((out_channels,), jnp.float32)
    return conv_w, conv_b, gamma, beta


def _reference_forward(x, conv_w, conv_b, gamma, beta, *, kernel_size, stride,
                       upsample, normalize, relu, eps):
    if upsample:
        x = jnp.repeat(jnp.repeat(x, 2, axis=2), 2, axis=3)
    p = kernel_size // 2
    if p:
        x = jnp.pad(x, ((0, 0), (0, 0), (p, p), (p, p)), mode="reflect")
    y = jax.lax.conv_general_dilated(
        x, conv_w, window_strides=(stride, stride), padding="VALID",
        dimension_numbers=("NCHW", "OIHW", "NCHW"))
    y = y + conv_b[None, :, None, None]
    if normalize:
        mean = y.mean(axis=(2, 3), keepdims=True)
        var = ((y - mean) ** 2).mean(axis=(2, 3), keepdims=True)
        y = (y - mean) * jax.lax.rsqrt(var + eps)
        y = y * gamma[None, :, None, None] + beta[None, :, None, None]
    if relu:
        y = jnp.maximum(y, 0.0)
    return y


def _check(out, ref, tag):
    tol = 5e-2 * max(1.0, float(jnp.max(jnp.abs(ref))))
    err = float(jnp.max(jnp.abs(out - ref)))
    assert err < tol, f"{tag}: mismatch vs reference: {err} (tol {tol})"


if __name__ == "__main__":
    key = jax.random.PRNGKey(0)
    k_x, k_p = jax.random.split(key)

    batch, in_ch, out_ch, spatial, ksize = 2, 4, 8, 16, 3
    x = jax.random.normal(k_x, (batch, in_ch, spatial, spatial), dtype=jnp.float32)
    conv_w, conv_b, gamma, beta = init_conv_block_params(k_p, in_ch, out_ch, ksize)

    # Case 1: standard ConvBlock (norm + relu)
    fwd1 = jax.jit(functools.partial(
        conv_block_forward, kernel_size=ksize, stride=1,
        upsample=False, normalize=True, relu=True))
    out1 = fwd1(x, conv_w, conv_b, gamma, beta)
    jax.block_until_ready(out1)
    assert out1.shape == (batch, out_ch, spatial, spatial), out1.shape
    assert bool(jnp.all(out1 >= 0.0))
    ref1 = _reference_forward(x, conv_w, conv_b, gamma, beta, kernel_size=ksize,
                              stride=1, upsample=False, normalize=True, relu=True, eps=1e-5)
    _check(out1, ref1, "norm+relu")

    # Case 2: upsampling ConvBlock without normalization (fused bias+ReLU epilogue)
    fwd2 = jax.jit(functools.partial(
        conv_block_forward, kernel_size=ksize, stride=1,
        upsample=True, normalize=False, relu=True))
    out2 = fwd2(x, conv_w, conv_b, gamma, beta)
    jax.block_until_ready(out2)
    assert out2.shape == (batch, out_ch, 2 * spatial, 2 * spatial), out2.shape
    ref2 = _reference_forward(x, conv_w, conv_b, gamma, beta, kernel_size=ksize,
                              stride=1, upsample=True, normalize=False, relu=True, eps=1e-5)
    _check(out2, ref2, "upsample+relu")

    print("KERNEL_OK")
</pallas_src>

<mosaic_0001>
module attributes {stable_mosaic.version = 11 : i64} {
  func.func @_conv_rows_kernel(%arg0: i32, %arg1: i32, %arg2: i32, %arg3: memref<1x1x18x4xbf16, #tpu.memory_space<vmem>>, %arg4: memref<3x3x4x128xbf16, #tpu.memory_space<vmem>>, %arg5: memref<1x128xf32, #tpu.memory_space<vmem>>, %arg6: memref<1x1x16x128xbf16, #tpu.memory_space<vmem>>, %arg7: memref<16x128xf32, #tpu.memory_space<vmem>>) attributes {dimension_semantics = [#tpu.dimension_semantics<parallel>, #tpu.dimension_semantics<parallel>, #tpu.dimension_semantics<arbitrary>], iteration_bounds = array<i64: 2, 16, 3>, scalar_prefetch = 0 : i64, scratch_operands = 1 : i64, tpu.core_type = #tpu.core_type<tc>, window_params = [{transform_indices = @transform_0, window_bounds = array<i64: 1, 1, 18, 4>}, {pipeline_mode = #tpu.pipeline_mode<synchronous>, transform_indices = @transform_1, window_bounds = array<i64: 3, 3, 4, 128>}, {pipeline_mode = #tpu.pipeline_mode<synchronous>, transform_indices = @transform_2, window_bounds = array<i64: 1, 128>}, {transform_indices = @transform_3, window_bounds = array<i64: 1, 1, 16, 128>}]} {
    %c0_i32 = arith.constant 0 : i32
    %0 = arith.cmpi eq, %arg2, %c0_i32 : i32
    %1 = arith.extui %0 : i1 to i32
    %c0_i32_0 = arith.constant 0 : i32
    %2 = arith.cmpi ne, %1, %c0_i32_0 : i32
    scf.if %2 {
      %cst_18 = arith.constant 0.000000e+00 : f32
      %28 = vector.broadcast %cst_18 : f32 to vector<16x128xf32>
      %c0_19 = arith.constant 0 : index
      %c0_20 = arith.constant 0 : index
      %29 = vector.load %arg7[%c0_19, %c0_20] : memref<16x128xf32, #tpu.memory_space<vmem>>, vector<16x128xf32>
      tpu.vector_store %arg7[%c0_19, %c0_20], %28 {strides = array<i32>} : memref<16x128xf32, #tpu.memory_space<vmem>>, vector<16x128xf32>,
    } else {
    }
    %c0 = arith.constant 0 : index
    %c0_1 = arith.constant 0 : index
    %c0_2 = arith.constant 0 : index
    %c0_3 = arith.constant 0 : index
    %3 = vector.load %arg3[%c0, %c0_1, %c0_2, %c0_3] : memref<1x1x18x4xbf16, #tpu.memory_space<vmem>>, vector<1x1x18x4xbf16>
    %4 = vector.shape_cast %3 : vector<1x1x18x4xbf16> to vector<18x4xbf16>
    %c0_4 = arith.constant 0 : index
    %c0_5 = arith.constant 0 : index
    %5 = vector.load %arg7[%c0_4, %c0_5] : memref<16x128xf32, #tpu.memory_space<vmem>>, vector<16x128xf32>
    %6 = vector.extract_strided_slice %4 {offsets = [0, 0], sizes = [16, 4], strides = [1, 1]} : vector<18x4xbf16> to vector<16x4xbf16>
    %7 = arith.index_cast %arg2 : i32 to index
    %c0_6 = arith.constant 0 : index
    %c0_7 = arith.constant 0 : index
    %c0_8 = arith.constant 0 : index
    %8 = vector.load %arg4[%7, %c0_6, %c0_7, %c0_8] : memref<3x3x4x128xbf16, #tpu.memory_space<vmem>>, vector<1x1x4x128xbf16>
    %9 = vector.shape_cast %8 : vector<1x1x4x128xbf16> to vector<4x128xbf16>
    %cst = arith.constant dense<0.000000e+00> : vector<16x128xf32>
    %10 = tpu.matmul %6, %9, %cst {dimension_numbers = #tpu.dot_dimension_numbers<[1], [0], [0], [1], [0, 0, 1, 1], [], []>} : vector<16x4xbf16>, vector<4x128xbf16>, vector<16x128xf32> -> vector<16x128xf32>
    %11 = arith.addf %5, %10 : vector<16x128xf32>
    %12 = vector.extract_strided_slice %4 {offsets = [1, 0], sizes = [16, 4], strides = [1, 1]} : vector<18x4xbf16> to vector<16x4xbf16>
    %13 = arith.index_cast %arg2 : i32 to index
    %c1 = arith.constant 1 : index
    %c0_9 = arith.constant 0 : index
    %c0_10 = arith.constant 0 : index
    %14 = vector.load %arg4[%13, %c1, %c0_9, %c0_10] : memref<3x3x4x128xbf16, #tpu.memory_space<vmem>>, vector<1x1x4x128xbf16>
    %15 = vector.shape_cast %14 : vector<1x1x4x128xbf16> to vector<4x128xbf16>
    %cst_11 = arith.constant dense<0.000000e+00> : vector<16x128xf32>
    %16 = tpu.matmul %12, %15, %cst_11 {dimension_numbers = #tpu.dot_dimension_numbers<[1], [0], [0], [1], [0, 0, 1, 1], [], []>} : vector<16x4xbf16>, vector<4x128xbf16>, vector<16x128xf32> -> vector<16x128xf32>
    %17 = arith.addf %11, %16 : vector<16x128xf32>
    %18 = vector.extract_strided_slice %4 {offsets = [2, 0], sizes = [16, 4], strides = [1, 1]} : vector<18x4xbf16> to vector<16x4xbf16>
    %19 = arith.index_cast %arg2 : i32 to index
    %c2 = arith.constant 2 : index
    %c0_12 = arith.constant 0 : index
    %c0_13 = arith.constant 0 : index
    %20 = vector.load %arg4[%19, %c2, %c0_12, %c0_13] : memref<3x3x4x128xbf16, #tpu.memory_space<vmem>>, vector<1x1x4x128xbf16>
    %21 = vector.shape_cast %20 : vector<1x1x4x128xbf16> to vector<4x128xbf16>
    %cst_14 = arith.constant dense<0.000000e+00> : vector<16x128xf32>
    %22 = tpu.matmul %18, %21, %cst_14 {dimension_numbers = #tpu.dot_dimension_numbers<[1], [0], [0], [1], [0, 0, 1, 1], [], []>} : vector<16x4xbf16>, vector<4x128xbf16>, vector<16x128xf32> -> vector<16x128xf32>
    %23 = arith.addf %17, %22 : vector<16x128xf32>
    %c0_15 = arith.constant 0 : index
    %c0_16 = arith.constant 0 : index
    %24 = vector.load %arg7[%c0_15, %c0_16] : memref<16x128xf32, #tpu.memory_space<vmem>>, vector<16x128xf32>
    tpu.vector_store %arg7[%c0_15, %c0_16], %23 {strides = array<i32>} : memref<16x128xf32, #tpu.memory_space<vmem>>, vector<16x128xf32>,
    %c2_i32 = arith.constant 2 : i32
    %25 = arith.cmpi eq, %arg2, %c2_i32 : i32
    %26 = arith.extui %25 : i1 to i32
    %c0_i32_17 = arith.constant 0 : i32
    %27 = arith.cmpi ne, %26, %c0_i32_17 : i32
    scf.if %27 {
      %c0_18 = arith.constant 0 : index
      %c0_19 = arith.constant 0 : index
      %28 = vector.load %arg7[%c0_18, %c0_19] : memref<16x128xf32, #tpu.memory_space<vmem>>, vector<16x128xf32>
      %c0_20 = arith.constant 0 : index
      %c0_21 = arith.constant 0 : index
      %29 = vector.load %arg5[%c0_20, %c0_21] : memref<1x128xf32, #tpu.memory_space<vmem>>, vector<1x128xf32>
      %30 = vector.broadcast %29 : vector<1x128xf32> to vector<16x128xf32>
      %31 = arith.addf %28, %30 : vector<16x128xf32>
      %32 = arith.truncf %31 : vector<16x128xf32> to vector<16x128xbf16>
      %c0_22 = arith.constant 0 : index
      %c0_23 = arith.constant 0 : index
      %c0_24 = arith.constant 0 : index
      %c0_25 = arith.constant 0 : index
      %33 = vector.load %arg6[%c0_22, %c0_23, %c0_24, %c0_25] : memref<1x1x16x128xbf16, #tpu.memory_space<vmem>>, vector<1x1x16x128xbf16>
      %34 = vector.shape_cast %33 : vector<1x1x16x128xbf16> to vector<16x128xbf16>
      %35 = vector.shape_cast %32 : vector<16x128xbf16> to vector<1x1x16x128xbf16>
      tpu.vector_store %arg6[%c0_22, %c0_23, %c0_24, %c0_25], %35 {strides = array<i32>} : memref<1x1x16x128xbf16, #tpu.memory_space<vmem>>, vector<1x1x16x128xbf16>,
    } else {
    }
    return
  }
  func.func @transform_0(%arg0: i32, %arg1: i32, %arg2: i32) -> (i32, i32, i32, i32) {
    %c1_i32 = arith.constant 1 : i32
    %0 = arith.muli %arg1, %c1_i32 : i32
    %1 = arith.addi %0, %arg2 : i32
    %c0_i32 = arith.constant 0 : i32
    %c0_i32_0 = arith.constant 0 : i32
    %c0_i32_1 = arith.constant 0 : i32
    return %arg0, %1, %c0_i32, %c0_i32_0 : i32, i32, i32, i32
  }
  func.func @transform_1(%arg0: i32, %arg1: i32, %arg2: i32) -> (i32, i32, i32, i32) {
    %c0_i32 = arith.constant 0 : i32
    %c0_i32_0 = arith.constant 0 : i32
    %c0_i32_1 = arith.constant 0 : i32
    %c0_i32_2 = arith.constant 0 : i32
    %c0_i32_3 = arith.constant 0 : i32
    return %c0_i32, %c0_i32_0, %c0_i32_1, %c0_i32_2 : i32, i32, i32, i32
  }
  func.func @transform_2(%arg0: i32, %arg1: i32, %arg2: i32) -> (i32, i32) {
    %c0_i32 = arith.constant 0 : i32
    %c0_i32_0 = arith.constant 0 : i32
    %c0_i32_1 = arith.constant 0 : i32
    return %c0_i32, %c0_i32_0 : i32, i32
  }
  func.func @transform_3(%arg0: i32, %arg1: i32, %arg2: i32) -> (i32, i32, i32, i32) {
    %c0_i32 = arith.constant 0 : i32
    %c0_i32_0 = arith.constant 0 : i32
    %c0_i32_1 = arith.constant 0 : i32
    return %arg0, %arg1, %c0_i32, %c0_i32_0 : i32, i32, i32, i32
  }
}

module attributes {stable_mosaic.version = 11 : i64} {
  func.func @_in_stats_kernel(%arg0: i32, %arg1: i32, %arg2: i32, %arg3: memref<1x16x16x128xbf16, #tpu.memory_space<vmem>>, %arg4: memref<1x2x128xf32, #tpu.memory_space<vmem>>) attributes {dimension_semantics = [#tpu.dimension_semantics<parallel>, #tpu.dimension_semantics<parallel>, #tpu.dimension_semantics<arbitrary>], iteration_bounds = array<i64: 2, 1, 1>, scalar_prefetch = 0 : i64, scratch_operands = 0 : i64, tpu.core_type = #tpu.core_type<tc>, window_params = [{transform_indices = @transform_0, window_bounds = array<i64: 1, 16, 16, 128>}, {transform_indices = @transform_1, window_bounds = array<i64: 1, 2, 128>}]} {
    %c0_i32 = arith.constant 0 : i32
    %0 = arith.cmpi eq, %arg2, %c0_i32 : i32
    %1 = arith.extui %0 : i1 to i32
    %c0_i32_0 = arith.constant 0 : i32
    %2 = arith.cmpi ne, %1, %c0_i32_0 : i32
    scf.if %2 {
      %cst_18 = arith.constant 0.000000e+00 : f32
      %25 = vector.broadcast %cst_18 : f32 to vector<1x2x128xf32>
      %c0_19 = arith.constant 0 : index
      %c0_20 = arith.constant 0 : index
      %c0_21 = arith.constant 0 : index
      %26 = vector.load %arg4[%c0_19, %c0_20, %c0_21] : memref<1x2x128xf32, #tpu.memory_space<vmem>>, vector<1x2x128xf32>
      tpu.vector_store %arg4[%c0_19, %c0_20, %c0_21], %25 {strides = array<i32>} : memref<1x2x128xf32, #tpu.memory_space<vmem>>, vector<1x2x128xf32>,
    } else {
    }
    %c0 = arith.constant 0 : index
    %c0_1 = arith.constant 0 : index
    %c0_2 = arith.constant 0 : index
    %c0_3 = arith.constant 0 : index
    %3 = vector.load %arg3[%c0, %c0_1, %c0_2, %c0_3] : memref<1x16x16x128xbf16, #tpu.memory_space<vmem>>, vector<1x16x16x128xbf16>
    %4 = vector.shape_cast %3 : vector<1x16x16x128xbf16> to vector<16x16x128xbf16>
    %5 = arith.extf %4 : vector<16x16x128xbf16> to vector<16x16x128xf32>
    %cst = arith.constant dense<0.000000e+00> : vector<16x128xf32>
    %6 = vector.multi_reduction <add>, %5, %cst [0] : vector<16x16x128xf32> to vector<16x128xf32>
    %cst_4 = arith.constant dense<0.000000e+00> : vector<128xf32>
    %7 = vector.multi_reduction <add>, %6, %cst_4 [0] : vector<16x128xf32> to vector<128xf32>
    %8 = vector.shape_cast %7 : vector<128xf32> to vector<1x128xf32>
    %9 = arith.mulf %5, %5 : vector<16x16x128xf32>
    %cst_5 = arith.constant dense<0.000000e+00> : vector<16x128xf32>
    %10 = vector.multi_reduction <add>, %9, %cst_5 [0] : vector<16x16x128xf32> to vector<16x128xf32>
    %cst_6 = arith.constant dense<0.000000e+00> : vector<128xf32>
    %11 = vector.multi_reduction <add>, %10, %cst_6 [0] : vector<16x128xf32> to vector<128xf32>
    %12 = vector.shape_cast %11 : vector<128xf32> to vector<1x128xf32>
    %c0_7 = arith.constant 0 : index
    %c0_8 = arith.constant 0 : index
    %c0_9 = arith.constant 0 : index
    %13 = vector.load %arg4[%c0_7, %c0_8, %c0_9] : memref<1x2x128xf32, #tpu.memory_space<vmem>>, vector<1x1x128xf32>
    %14 = vector.shape_cast %13 : vector<1x1x128xf32> to vector<1x128xf32>
    %15 = arith.addf %14, %8 : vector<1x128xf32>
    %c0_10 = arith.constant 0 : index
    %c0_11 = arith.constant 0 : index
    %c0_12 = arith.constant 0 : index
    %16 = vector.load %arg4[%c0_10, %c0_11, %c0_12] : memref<1x2x128xf32, #tpu.memory_space<vmem>>, vector<1x1x128xf32>
    %17 = vector.shape_cast %16 : vector<1x1x128xf32> to vector<1x128xf32>
    %18 = vector.shape_cast %15 : vector<1x128xf32> to vector<1x1x128xf32>
    tpu.vector_store %arg4[%c0_10, %c0_11, %c0_12], %18 {strides = array<i32>} : memref<1x2x128xf32, #tpu.memory_space<vmem>>, vector<1x1x128xf32>,
    %c0_13 = arith.constant 0 : index
    %c1 = arith.constant 1 : index
    %c0_14 = arith.constant 0 : index
    %19 = vector.load %arg4[%c0_13, %c1, %c0_14] : memref<1x2x128xf32, #tpu.memory_space<vmem>>, vector<1x1x128xf32>
    %20 = vector.shape_cast %19 : vector<1x1x128xf32> to vector<1x128xf32>
    %21 = arith.addf %20, %12 : vector<1x128xf32>
    %c0_15 = arith.constant 0 : index
    %c1_16 = arith.constant 1 : index
    %c0_17 = arith.constant 0 : index
    %22 = vector.load %arg4[%c0_15, %c1_16, %c0_17] : memref<1x2x128xf32, #tpu.memory_space<vmem>>, vector<1x1x128xf32>
    %23 = vector.shape_cast %22 : vector<1x1x128xf32> to vector<1x128xf32>
    %24 = vector.shape_cast %21 : vector<1x128xf32> to vector<1x1x128xf32>
    tpu.vector_store %arg4[%c0_15, %c1_16, %c0_17], %24 {strides = array<i32>} : memref<1x2x128xf32, #tpu.memory_space<vmem>>, vector<1x1x128xf32>,
    return
  }
  func.func @transform_0(%arg0: i32, %arg1: i32, %arg2: i32) -> (i32, i32, i32, i32) {
    %c0_i32 = arith.constant 0 : i32
    %c0_i32_0 = arith.constant 0 : i32
    return %arg0, %arg2, %c0_i32, %arg1 : i32, i32, i32, i32
  }
  func.func @transform_1(%arg0: i32, %arg1: i32, %arg2: i32) -> (i32, i32, i32) {
    %c0_i32 = arith.constant 0 : i32
    %c0_i32_0 = arith.constant 0 : i32
    return %arg0, %c0_i32, %arg1 : i32, i32, i32
  }
}

module attributes {stable_mosaic.version = 11 : i64} {
  func.func @_in_apply_kernel(%arg0: i32, %arg1: i32, %arg2: i32, %arg3: memref<1x16x16x128xbf16, #tpu.memory_space<vmem>>, %arg4: memref<1x1x128xf32, #tpu.memory_space<vmem>>, %arg5: memref<1x1x128xf32, #tpu.memory_space<vmem>>, %arg6: memref<1x16x16x128xf32, #tpu.memory_space<vmem>>) attributes {dimension_semantics = [#tpu.dimension_semantics<parallel>, #tpu.dimension_semantics<parallel>, #tpu.dimension_semantics<parallel>], iteration_bounds = array<i64: 2, 1, 1>, scalar_prefetch = 0 : i64, scratch_operands = 0 : i64, tpu.core_type = #tpu.core_type<tc>, window_params = [{transform_indices = @transform_0, window_bounds = array<i64: 1, 16, 16, 128>}, {transform_indices = @transform_1, window_bounds = array<i64: 1, 1, 128>}, {transform_indices = @transform_2, window_bounds = array<i64: 1, 1, 128>}, {transform_indices = @transform_3, window_bounds = array<i64: 1, 16, 16, 128>}]} {
    %c0 = arith.constant 0 : index
    %c0_0 = arith.constant 0 : index
    %c0_1 = arith.constant 0 : index
    %c0_2 = arith.constant 0 : index
    %0 = vector.load %arg3[%c0, %c0_0, %c0_1, %c0_2] : memref<1x16x16x128xbf16, #tpu.memory_space<vmem>>, vector<1x16x16x128xbf16>
    %1 = vector.shape_cast %0 : vector<1x16x16x128xbf16> to vector<16x16x128xbf16>
    %2 = arith.extf %1 : vector<16x16x128xbf16> to vector<16x16x128xf32>
    %c0_3 = arith.constant 0 : index
    %c0_4 = arith.constant 0 : index
    %c0_5 = arith.constant 0 : index
    %3 = vector.load %arg4[%c0_3, %c0_4, %c0_5] : memref<1x1x128xf32, #tpu.memory_space<vmem>>, vector<1x1x128xf32>
    %4 = vector.shape_cast %3 : vector<1x1x128xf32> to vector<1x128xf32>
    %5 = vector.shape_cast %4 : vector<1x128xf32> to vector<1x1x128xf32>
    %c0_6 = arith.constant 0 : index
    %c0_7 = arith.constant 0 : index
    %c0_8 = arith.constant 0 : index
    %6 = vector.load %arg5[%c0_6, %c0_7, %c0_8] : memref<1x1x128xf32, #tpu.memory_space<vmem>>, vector<1x1x128xf32>
    %7 = vector.shape_cast %6 : vector<1x1x128xf32> to vector<1x128xf32>
    %8 = vector.shape_cast %7 : vector<1x128xf32> to vector<1x1x128xf32>
    %9 = vector.broadcast %5 : vector<1x1x128xf32> to vector<16x16x128xf32>
    %10 = arith.mulf %2, %9 : vector<16x16x128xf32>
    %11 = vector.broadcast %8 : vector<1x1x128xf32> to vector<16x16x128xf32>
    %12 = arith.addf %10, %11 : vector<16x16x128xf32>
    %cst = arith.constant 0.000000e+00 : f32
    %13 = vector.broadcast %cst : f32 to vector<16x16x128xf32>
    %14 = arith.maximumf %12, %13 : vector<16x16x128xf32>
    %c0_9 = arith.constant 0 : index
    %c0_10 = arith.constant 0 : index
    %c0_11 = arith.constant 0 : index
    %c0_12 = arith.constant 0 : index
    %15 = vector.load %arg6[%c0_9, %c0_10, %c0_11, %c0_12] : memref<1x16x16x128xf32, #tpu.memory_space<vmem>>, vector<1x16x16x128xf32>
    %16 = vector.shape_cast %15 : vector<1x16x16x128xf32> to vector<16x16x128xf32>
    %17 = vector.shape_cast %14 : vector<16x16x128xf32> to vector<1x16x16x128xf32>
    tpu.vector_store %arg6[%c0_9, %c0_10, %c0_11, %c0_12], %17 {strides = array<i32>} : memref<1x16x16x128xf32, #tpu.memory_space<vmem>>, vector<1x16x16x128xf32>,
    return
  }
  func.func @transform_0(%arg0: i32, %arg1: i32, %arg2: i32) -> (i32, i32, i32, i32) {
    %c0_i32 = arith.constant 0 : i32
    %c0_i32_0 = arith.constant 0 : i32
    return %arg0, %arg2, %c0_i32, %arg1 : i32, i32, i32, i32
  }
  func.func @transform_1(%arg0: i32, %arg1: i32, %arg2: i32) -> (i32, i32, i32) {
    %c0_i32 = arith.constant 0 : i32
    %c0_i32_0 = arith.constant 0 : i32
    return %arg0, %c0_i32, %arg1 : i32, i32, i32
  }
  func.func @transform_2(%arg0: i32, %arg1: i32, %arg2: i32) -> (i32, i32, i32) {
    %c0_i32 = arith.constant 0 : i32
    %c0_i32_0 = arith.constant 0 : i32
    return %arg0, %c0_i32, %arg1 : i32, i32, i32
  }
  func.func @transform_3(%arg0: i32, %arg1: i32, %arg2: i32) -> (i32, i32, i32, i32) {
    %c0_i32 = arith.constant 0 : i32
    %c0_i32_0 = arith.constant 0 : i32
    return %arg0, %arg2, %c0_i32, %arg1 : i32, i32, i32, i32
  }
}

</mosaic_0001>

<llo_original>
// kernel: conv_block_forward.4
$region0: #{conv_block_forward.4}
  #allocation0 [shape = 'u32[]', space=smem, size = 0x4, offset = 0x4, fixed_abs, tag = 'smem constant byte address 0x4 - core index']
  #allocation1 [shape = 'u32[72,128]{1,0:T(1,128)}', space=vmem, size = 0x9000, scoped, tag = 'internal scratch']
  %s0 = inlined_call_operand.vmem [shape: bf16[2,16,16,128], index: 0, kind: input, shape index: {}]
  %s1 = inlined_call_operand.vmem [shape: f32[2,2,128], index: 1, kind: output, shape index: {}]
  %s2 = sld [smem:[#allocation0]]
  $region41: #{conv_block_forward.4} parent=0
    _
  %s4 = ssub.s32 1, %s2
  %s5 = scalar_select 0, %s4, %s2
  loop: start=0, step=1, limit=4
  $region2: #{conv_block_forward.4} parent=0 // loop_pre_header
    _
  $region3: #{conv_block_forward.4} parent=0 // loop_header
    %s7 = sphi 0, %s11
    %p8 = scmp.ge.s32.totalorder %s7, 4
    %s14 = sphi 0, %s33
    %s15 = sphi 0, %s29
    %s16 = sphi 0, %s25
    %s17 = sphi 0, %s14
    %s18 = sphi 0, %s15
    %s19 = sphi 0, %s16
    %s20 = sphi 0, %s17
    %s21 = sphi 0, %s18
    %s22 = sphi 0, %s19
    %s40 = sphi 0, %s42
    %s43 = sphi 0, %s40
    %s44 = sphi 0, %s43
    %s60 = sphi 0, %s44
    %s68 = sphi 0, %s70
    %s71 = sphi 0, %s68
    %s72 = sphi 0, %s71
    %s88 = sphi 0, %s72
  $region4: #{conv_block_forward.4} parent=0 // loop_header_branch
    %10 = sbr.rel (%p8) target = $region8
  $region5: #{conv_block_forward.4} parent=0 // loop_body
    %s12 = ssub.s32 %s7, 1
    %s13 = ssub.s32 %s7, 2
    %s23 = sadd.s32 1, %s16
    %p24 = scmp.ge.s32.totalorder %s23, 1
    %s25 = scalar_select %p24, 0, %s23
    %s26 = sadd.s32 1, %s15
    %s27 = scalar_select %p24, %s26, %s15
    %p28 = scmp.ge.s32.totalorder %s27, 1
    %s29 = scalar_select %p28, 0, %s27
    %s30 = sadd.s32 1, %s14
    %s31 = scalar_select %p28, %s30, %s14
    %p32 = scmp.ge.s32.totalorder %s31, 2
    %s33 = scalar_select %p32, 0, %s31
    %s34 = ssub.s32 %s14, %s33
    %s35 = ssub.s32 %s16, %s25
    %s36 = sor.u32 %s34, %s35
    %s37 = ssub.s32 %s15, %s29
    %s38 = sor.u32 %s36, %s37
    %p39 = scmp.eq.s32.totalorder %s38, 0
    %s41 = sadd.s32 %s40, 1
    %s42 = scalar_select %p39, %s40, %s41
    %p45 = pneg %p39
    %p46 = scmp.eq.s32.totalorder %s7, 1
    %p47 = por %p45, %p46
    %p48 = scmp.ne.s32.totalorder %s40, %s43
    %p49 = scmp.eq.s32.totalorder %s7, 0
    %p50 = por %p48, %p49
    %p51 = scmp.ne.s32.totalorder %s40, %s43
    %p52 = scmp.eq.s32.totalorder %s12, 1
    %p53 = por %p51, %p52
    %p54 = scmp.ne.s32.totalorder %s43, %s44
    %p55 = scmp.eq.s32.totalorder %s12, 0
    %p56 = por %p54, %p55
    %p57 = scmp.ne.s32.totalorder %s43, %s44
    %p58 = scmp.eq.s32.totalorder %s13, 1
    %p59 = por %p57, %p58
    %p61 = scmp.ne.s32.totalorder %s44, %s60
    %p62 = scmp.eq.s32.totalorder %s13, 0
    %p63 = por %p61, %p62
    %s64 = ssub.s32 %s14, %s33
    %s65 = ssub.s32 %s15, %s29
    %s66 = sor.u32 %s64, %s65
    %p67 = scmp.eq.s32.totalorder %s66, 0
    %s69 = sadd.s32 %s68, 1
    %s70 = scalar_select %p67, %s68, %s69
    %p73 = pneg %p67
    %p74 = scmp.eq.s32.totalorder %s7, 1
    %p75 = por %p73, %p74
    %p76 = scmp.ne.s32.totalorder %s68, %s71
    %p77 = scmp.eq.s32.totalorder %s7, 0
    %p78 = por %p76, %p77
    %p79 = scmp.ne.s32.totalorder %s68, %s71
    %p80 = scmp.eq.s32.totalorder %s12, 1
    %p81 = por %p79, %p80
    %p82 = scmp.ne.s32.totalorder %s71, %s72
    %p83 = scmp.eq.s32.totalorder %s12, 0
    %p84 = por %p82, %p83
    %p85 = scmp.ne.s32.totalorder %s71, %s72
    %p86 = scmp.eq.s32.totalorder %s13, 1
    %p87 = por %p85, %p86
    %p89 = scmp.ne.s32.totalorder %s72, %s88
    %p90 = scmp.eq.s32.totalorder %s13, 0
    %p91 = por %p89, %p90
    %p92 = scmp.le.s32.totalorder 1, %s7
    %p93 = scmp.lt.s32.totalorder %s7, 3
    %p94 = pnand %p92, %p93
    %p95 = pneg %p94
    // Predicated region
    $region9: #{conv_block_forward.4} parent=5 // pred_check
      _
    $region10: #{conv_block_forward.4} parent=5 // pred_check_branch
      %97 = sbr.rel (%p94) target = $region12
    $region11: #{conv_block_forward.4} parent=5 // pred_region
      %s98 = ssub.s32 %s7, 1
    $region12: #{conv_block_forward.4} parent=5 // pred_fallthru
      _
    %p99 = scmp.lt.s32.totalorder %s7, 2
    // Predicated region
    $region13: #{conv_block_forward.4} parent=5 // pred_check
      %p100 = pneg %p99
    $region14: #{conv_block_forward.4} parent=5 // pred_check_branch
      %102 = sbr.rel (%p100) target = $region16
    $region15: #{conv_block_forward.4} parent=5 // pred_region
      // Predicated region
      $region17: #{conv_block_forward.4} parent=15 // pred_check
        %p103 = pneg %p50
      $region18: #{conv_block_forward.4} parent=15 // pred_check_branch
        %105 = sbr.rel (%p103) target = $region20
      $region19: #{conv_block_forward.4} parent=15 // pred_region
        %s106 = smul.u32 16, %s16
        %p107 = scmp.lt.s32.totalorder %s14, 1
        %s108 = scalar_select %p107, %s14, 1
        %p109 = scmp.lt.s32.totalorder %s106, 15
        %s110 = scalar_select %p109, %s106, 15
        %p111 = scmp.lt.s32.totalorder %s15, 0
        %s112 = scalar_select %p111, %s15, 0
        %s113 = smul.addr %s110, 2
        %s114 = sadd.s32 %s112, %s113
        %s115 = smul.addr %s108, 32
        %s116 = sadd.s32 %s114, %s115
        %s117 = smul.addr %s116, 4
        %s118 = scalar_lea.vmem %s0, %s117
        %s119 = smul.u32 16, %s16
      $region20: #{conv_block_forward.4} parent=15 // pred_fallthru
        _
    $region16: #{conv_block_forward.4} parent=5 // pred_fallthru
      _
    %p120 = scmp.le.s32.totalorder 1, %s7
    %p121 = scmp.lt.s32.totalorder %s7, 3
    %p122 = pnand %p120, %p121
    %p123 = pneg %p122
    // Predicated region
    $region21: #{conv_block_forward.4} parent=5 // pred_check
      _
    $region22: #{conv_block_forward.4} parent=5 // pred_check_branch
      %125 = sbr.rel (%p122) target = $region24
    $region23: #{conv_block_forward.4} parent=5 // pred_region
      %s126 = ssub.s32 %s7, 1
      %s127 = smul.u32 16, %s19
      %p128 = scmp.lt.s32.totalorder %s17, 1
      %s129 = scalar_select %p128, %s17, 1
      %p130 = scmp.lt.s32.totalorder %s127, 15
      %s131 = scalar_select %p130, %s127, 15
      %p132 = scmp.lt.s32.totalorder %s18, 0
      %s133 = scalar_select %p132, %s18, 0
      %s134 = smul.addr %s131, 2
      %s135 = sadd.s32 %s133, %s134
      %s136 = smul.addr %s129, 32
      %s137 = sadd.s32 %s135, %s136
      %s138 = smul.addr %s137, 4
      %s139 = scalar_lea.vmem %s0, %s138
      %p140 = pneg %p56
      %p141 = pneg %p53
      %p142 = pneg %p84
      %p143 = pneg %p81
      %p144 = scmp.lt.s32.totalorder %s17, 1
      %s145 = scalar_select %p144, %s17, 1
      %p146 = scmp.lt.s32.totalorder %s18, 0
      %s147 = scalar_select %p146, %s18, 0
      %s148 = sadd.s32 %s147, %s145
      %s149 = smul.addr %s148, 2
      %s150 = scalar_lea.vmem %s1, %s149
      %s151 = smul.u32 16, %s19
      %p152 = scmp.lt.s32.totalorder %s17, 1
      %s153 = scalar_select %p152, %s17, 1
      %p154 = scmp.lt.s32.totalorder %s151, 15
      %s155 = scalar_select %p154, %s151, 15
      %p156 = scmp.lt.s32.totalorder %s18, 0
      %s157 = scalar_select %p156, %s18, 0
      %s158 = smul.addr %s155, 2
      %s159 = sadd.s32 %s157, %s158
      %s160 = smul.addr %s153, 32
      %s161 = sadd.s32 %s159, %s160
      %s162 = smul.addr %s161, 4
      %s163 = scalar_lea.vmem %s0, %s162
      %s164 = smul.u32 16, %s19
      %p165 = scmp.lt.s32.totalorder %s17, 1
      %s166 = scalar_select %p165, %s17, 1
      %p167 = scmp.lt.s32.totalorder %s18, 0
      %s168 = scalar_select %p167, %s18, 0
      %s169 = sadd.s32 %s168, %s166
      %s170 = smul.addr %s169, 2
      %s171 = scalar_lea.vmem %s1, %s170
      %p172 = scmp.eq.s32.totalorder %s19, 0
      // Predicated region
      $region25: #{conv_block_forward.4} parent=23 // pred_check
        %p173 = pneg %p172
      $region26: #{conv_block_forward.4} parent=23 // pred_check_branch
        %175 = sbr.rel (%p173) target = $region28
      $region27: #{conv_block_forward.4} parent=23 // pred_region
        %176 = vst [vmem:[%s171] sm:$0x3] 0.0
      $region28: #{conv_block_forward.4} parent=23 // pred_fallthru
        _
      %v177 = vld [vmem:[%s163] sm:$0xf]
      %v178 = vld [vmem:[%s163 + $0x4] sm:$0xf]
      %v179 = vld [vmem:[%s163 + $0x8] sm:$0xf]
      %v180 = vld [vmem:[%s163 + $0xc] sm:$0xf]
      %v181 = vld [vmem:[%s163 + $0x10] sm:$0xf]
      %v182 = vld [vmem:[%s163 + $0x14] sm:$0xf]
      %v183 = vld [vmem:[%s163 + $0x18] sm:$0xf]
      %v184 = vld [vmem:[%s163 + $0x1c] sm:$0xf]
      %v185 = vld [vmem:[%s163 + $0x20] sm:$0xf]
      %v186 = vld [vmem:[%s163 + $0x24] sm:$0xf]
      %v187 = vld [vmem:[%s163 + $0x28] sm:$0xf]
      %v188 = vld [vmem:[%s163 + $0x2c] sm:$0xf]
      %v189 = vld [vmem:[%s163 + $0x30] sm:$0xf]
      %v190 = vld [vmem:[%s163 + $0x34] sm:$0xf]
      %v191 = vld [vmem:[%s163 + $0x38] sm:$0xf]
      %v192 = vld [vmem:[%s163 + $0x3c] sm:$0xf]
      %v193 = vld [vmem:[%s163 + $0x40] sm:$0xf]
      %v194 = vld [vmem:[%s163 + $0x44] sm:$0xf]
      %v195 = vld [vmem:[%s163 + $0x48] sm:$0xf]
      %v196 = vld [vmem:[%s163 + $0x4c] sm:$0xf]
      %v197 = vld [vmem:[%s163 + $0x50] sm:$0xf]
      %v198 = vld [vmem:[%s163 + $0x54] sm:$0xf]
      %v199 = vld [vmem:[%s163 + $0x58] sm:$0xf]
      %v200 = vld [vmem:[%s163 + $0x5c] sm:$0xf]
      %v201 = vld [vmem:[%s163 + $0x60] sm:$0xf]
      %v202 = vld [vmem:[%s163 + $0x64] sm:$0xf]
      %v203 = vld [vmem:[%s163 + $0x68] sm:$0xf]
      %v204 = vld [vmem:[%s163 + $0x6c] sm:$0xf]
      %v205 = vld [vmem:[%s163 + $0x70] sm:$0xf]
      %v206 = vld [vmem:[%s163 + $0x74] sm:$0xf]
      %v207 = vld [vmem:[%s163 + $0x78] sm:$0xf]
      %v208 = vld [vmem:[%s163 + $0x7c] sm:$0xf]
      %v209 = vunpack.c.l.bf16 %v177
      %v210 = vunpack.c.l.bf16 %v178
      %v211 = vunpack.c.l.bf16 %v179
      %v212 = vunpack.c.l.bf16 %v180
      %v213 = vunpack.c.l.bf16 %v181
      %v214 = vunpack.c.l.bf16 %v182
      %v215 = vunpack.c.l.bf16 %v183
      %v216 = vunpack.c.l.bf16 %v184
      %v217 = vunpack.c.l.bf16 %v185
      %v218 = vunpack.c.l.bf16 %v186
      %v219 = vunpack.c.l.bf16 %v187
      %v220 = vunpack.c.l.bf16 %v188
      %v221 = vunpack.c.l.bf16 %v189
      %v222 = vunpack.c.l.bf16 %v190
      %v223 = vunpack.c.l.bf16 %v191
      %v224 = vunpack.c.l.bf16 %v192
      %v225 = vunpack.c.l.bf16 %v193
      %v226 = vunpack.c.l.bf16 %v194
      %v227 = vunpack.c.l.bf16 %v195
      %v228 = vunpack.c.l.bf16 %v196
      %v229 = vunpack.c.l.bf16 %v197
      %v230 = vunpack.c.l.bf16 %v198
      %v231 = vunpack.c.l.bf16 %v199
      %v232 = vunpack.c.l.bf16 %v200
      %v233 = vunpack.c.l.bf16 %v201
      %v234 = vunpack.c.l.bf16 %v202
      %v235 = vunpack.c.l.bf16 %v203
      %v236 = vunpack.c.l.bf16 %v204
      %v237 = vunpack.c.l.bf16 %v205
      %v238 = vunpack.c.l.bf16 %v206
      %v239 = vunpack.c.l.bf16 %v207
      %v240 = vunpack.c.l.bf16 %v208
      %v241 = vadd.f32 %v209, %v211
      %v242 = vadd.f32 %v241, %v213
      %v243 = vadd.f32 %v242, %v215
      %v244 = vadd.f32 %v243, %v217
      %v245 = vadd.f32 %v244, %v219
      %v246 = vadd.f32 %v245, %v221
      %v247 = vadd.f32 %v246, %v223
      %v248 = vadd.f32 %v247, %v225
      %v249 = vadd.f32 %v248, %v227
      %v250 = vadd.f32 %v249, %v229
      %v251 = vadd.f32 %v250, %v231
      %v252 = vadd.f32 %v251, %v233
      %v253 = vadd.f32 %v252, %v235
      %v254 = vadd.f32 %v253, %v237
      %v255 = vadd.f32 %v254, %v239
      %v256 = vadd.f32 %v210, %v212
      %v257 = vadd.f32 %v256, %v214
      %v258 = vadd.f32 %v257, %v216
      %v259 = vadd.f32 %v258, %v218
      %v260 = vadd.f32 %v259, %v220
      %v261 = vadd.f32 %v260, %v222
      %v262 = vadd.f32 %v261, %v224
      %v263 = vadd.f32 %v262, %v226
      %v264 = vadd.f32 %v263, %v228
      %v265 = vadd.f32 %v264, %v230
      %v266 = vadd.f32 %v265, %v232
      %v267 = vadd.f32 %v266, %v234
      %v268 = vadd.f32 %v267, %v236
      %v269 = vadd.f32 %v268, %v238
      %v270 = vadd.f32 %v269, %v240
      %v271 = vadd.f32 %v255, %v270
      %v272 = vrot.slane %v271, 4
      %v273 = vadd.f32 %v271, %v272
      %v274 = vrot.slane %v273, 2
      %v275 = vadd.f32 %v273, %v274
      %v276 = vrot.slane %v275, 1
      %v277 = vadd.f32 %v275, %v276
      %v278 = vmul.f32 %v209, %v209
      %v279 = vmul.f32 %v210, %v210
      %v280 = vmul.f32 %v211, %v211
      %v281 = vmul.f32 %v212, %v212
      %v282 = vmul.f32 %v213, %v213
      %v283 = vmul.f32 %v214, %v214
      %v284 = vmul.f32 %v215, %v215
      %v285 = vmul.f32 %v216, %v216
      %v286 = vmul.f32 %v217, %v217
      %v287 = vmul.f32 %v218, %v218
      %v288 = vmul.f32 %v219, %v219
      %v289 = vmul.f32 %v220, %v220
      %v290 = vmul.f32 %v221, %v221
      %v291 = vmul.f32 %v222, %v222
      %v292 = vmul.f32 %v223, %v223
      %v293 = vmul.f32 %v224, %v224
      %v294 = vmul.f32 %v225, %v225
      %v295 = vmul.f32 %v226, %v226
      %v296 = vmul.f32 %v227, %v227
      %v297 = vmul.f32 %v228, %v228
      %v298 = vmul.f32 %v229, %v229
      %v299 = vmul.f32 %v230, %v230
      %v300 = vmul.f32 %v231, %v231
      %v301 = vmul.f32 %v232, %v232
      %v302 = vmul.f32 %v233, %v233
      %v303 = vmul.f32 %v234, %v234
      %v304 = vmul.f32 %v235, %v235
      %v305 = vmul.f32 %v236, %v236
      %v306 = vmul.f32 %v237, %v237
      %v307 = vmul.f32 %v238, %v238
      %v308 = vmul.f32 %v239, %v239
      %v309 = vmul.f32 %v240, %v240
      %v310 = vadd.f32 %v278, %v280
      %v311 = vadd.f32 %v310, %v282
      %v312 = vadd.f32 %v311, %v284
      %v313 = vadd.f32 %v312, %v286
      %v314 = vadd.f32 %v313, %v288
      %v315 = vadd.f32 %v314, %v290
      %v316 = vadd.f32 %v315, %v292
      %v317 = vadd.f32 %v316, %v294
      %v318 = vadd.f32 %v317, %v296
      %v319 = vadd.f32 %v318, %v298
      %v320 = vadd.f32 %v319, %v300
      %v321 = vadd.f32 %v320, %v302
      %v322 = vadd.f32 %v321, %v304
      %v323 = vadd.f32 %v322, %v306
      %v324 = vadd.f32 %v323, %v308
      %v325 = vadd.f32 %v279, %v281
      %v326 = vadd.f32 %v325, %v283
      %v327 = vadd.f32 %v326, %v285
      %v328 = vadd.f32 %v327, %v287
      %v329 = vadd.f32 %v328, %v289
      %v330 = vadd.f32 %v329, %v291
      %v331 = vadd.f32 %v330, %v293
      %v332 = vadd.f32 %v331, %v295
      %v333 = vadd.f32 %v332, %v297
      %v334 = vadd.f32 %v333, %v299
      %v335 = vadd.f32 %v334, %v301
      %v336 = vadd.f32 %v335, %v303
      %v337 = vadd.f32 %v336, %v305
      %v338 = vadd.f32 %v337, %v307
      %v339 = vadd.f32 %v338, %v309
      %v340 = vadd.f32 %v324, %v339
      %v341 = vrot.slane %v340, 4
      %v342 = vadd.f32 %v340, %v341
      %v343 = vrot.slane %v342, 2
      %v344 = vadd.f32 %v342, %v343
      %v345 = vrot.slane %v344, 1
      %v346 = vadd.f32 %v344, %v345
      %v347 = vld [vmem:[%s171] sm:$0x1]
      %v348 = vadd.f32 %v347, %v277
      %349 = vst [vmem:[%s171] sm:$0x1] %v348
      %v350 = vld [vmem:[%s171 + $0x1] sm:$0x1]
      %v351 = vadd.f32 %v350, %v346
      %352 = vst [vmem:[%s171 + $0x1] sm:$0x1] %v351
      %p353 = scmp.lt.s32.totalorder %s17, 1
      %s354 = scalar_select %p353, %s17, 1
      %p355 = scmp.lt.s32.totalorder %s18, 0
      %s356 = scalar_select %p355, %s18, 0
      %s357 = sadd.s32 %s356, %s354
      %s358 = smul.addr %s357, 2
      %s359 = scalar_lea.vmem %s1, %s358
      // Predicated region
      $region29: #{conv_block_forward.4} parent=23 // pred_check
        %p360 = pneg %p81
      $region30: #{conv_block_forward.4} parent=23 // pred_check_branch
        %362 = sbr.rel (%p360) target = $region32
      $region31: #{conv_block_forward.4} parent=23 // pred_region
        _
      $region32: #{conv_block_forward.4} parent=23 // pred_fallthru
        _
    $region24: #{conv_block_forward.4} parent=5 // pred_fallthru
      _
    %p363 = scmp.le.s32.totalorder 2, %s7
    // Predicated region
    $region33: #{conv_block_forward.4} parent=5 // pred_check
      %p364 = pneg %p363
    $region34: #{conv_block_forward.4} parent=5 // pred_check_branch
      %366 = sbr.rel (%p364) target = $region36
    $region35: #{conv_block_forward.4} parent=5 // pred_region
      %s367 = ssub.s32 %s7, 2
      // Predicated region
      $region37: #{conv_block_forward.4} parent=35 // pred_check
        %p368 = pneg %p87
      $region38: #{conv_block_forward.4} parent=35 // pred_check_branch
        %370 = sbr.rel (%p368) target = $region40
      $region39: #{conv_block_forward.4} parent=35 // pred_region
        %p371 = scmp.lt.s32.totalorder %s20, 1
        %s372 = scalar_select %p371, %s20, 1
        %p373 = scmp.lt.s32.totalorder %s21, 0
        %s374 = scalar_select %p373, %s21, 0
        %s375 = sadd.s32 %s374, %s372
        %s376 = smul.addr %s375, 2
        %s377 = scalar_lea.vmem %s1, %s376
      $region40: #{conv_block_forward.4} parent=35 // pred_fallthru
        _
    $region36: #{conv_block_forward.4} parent=5 // pred_fallthru
      _
  $region6: #{conv_block_forward.4} parent=0 // loop_footer
    %s11 = sadd.s32 1, %s7
  $region7: #{conv_block_forward.4} parent=0 // loop_footer_branch
    %6 = sbr.rel target = $region3
  $region8: #{conv_block_forward.4} parent=0 // loop_exit
    _

// kernel: conv_block_forward.5
$region0: #{conv_block_forward.5}
  #allocation0 [shape = 'u32[]', space=smem, size = 0x4, offset = 0x4, fixed_abs, tag = 'smem constant byte address 0x4 - core index']
  #allocation1 [shape = 'u32[72,128]{1,0:T(1,128)}', space=vmem, size = 0x9000, scoped, tag = 'internal scratch']
  %s0 = inlined_call_operand.vmem [shape: bf16[2,16,16,128], index: 0, kind: input, shape index: {}]
  %s1 = inlined_call_operand.vmem [shape: f32[2,1,128], index: 1, kind: input, shape index: {}]
  %s2 = inlined_call_operand.vmem [shape: f32[2,1,128], index: 2, kind: input, shape index: {}]
  %s3 = inlined_call_operand.vmem [shape: f32[2,16,16,128], index: 3, kind: output, shape index: {}]
  %s4 = sld [smem:[#allocation0]]
  $region45: #{conv_block_forward.5} parent=0
    _
  %s6 = ssub.s32 1, %s4
  %s7 = scalar_select 0, %s6, %s4
  loop: start=0, step=1, limit=4
  $region2: #{conv_block_forward.5} parent=0 // loop_pre_header
    _
  $region3: #{conv_block_forward.5} parent=0 // loop_header
    %s9 = sphi 0, %s13
    %p10 = scmp.ge.s32.totalorder %s9, 4
    %s16 = sphi 0, %s35
    %s17 = sphi 0, %s31
    %s18 = sphi 0, %s27
    %s19 = sphi 0, %s16
    %s20 = sphi 0, %s17
    %s21 = sphi 0, %s18
    %s22 = sphi 0, %s19
    %s23 = sphi 0, %s20
    %s24 = sphi 0, %s21
    %s42 = sphi 0, %s44
    %s45 = sphi 0, %s42
    %s46 = sphi 0, %s45
    %s62 = sphi 0, %s46
    %s70 = sphi 0, %s72
    %s73 = sphi 0, %s70
    %s74 = sphi 0, %s73
    %s90 = sphi 0, %s74
    %s98 = sphi 0, %s100
    %s101 = sphi 0, %s98
    %s102 = sphi 0, %s101
    %s118 = sphi 0, %s102
    %s128 = sphi 0, %s130
    %s131 = sphi 0, %s128
    %s132 = sphi 0, %s131
    %s148 = sphi 0, %s132
  $region4: #{conv_block_forward.5} parent=0 // loop_header_branch
    %12 = sbr.rel (%p10) target = $region8
  $region5: #{conv_block_forward.5} parent=0 // loop_body
    %s14 = ssub.s32 %s9, 1
    %s15 = ssub.s32 %s9, 2
    %s25 = sadd.s32 1, %s18
    %p26 = scmp.ge.s32.totalorder %s25, 1
    %s27 = scalar_select %p26, 0, %s25
    %s28 = sadd.s32 1, %s17
    %s29 = scalar_select %p26, %s28, %s17
    %p30 = scmp.ge.s32.totalorder %s29, 1
    %s31 = scalar_select %p30, 0, %s29
    %s32 = sadd.s32 1, %s16
    %s33 = scalar_select %p30, %s32, %s16
    %p34 = scmp.ge.s32.totalorder %s33, 2
    %s35 = scalar_select %p34, 0, %s33
    %s36 = ssub.s32 %s16, %s35
    %s37 = ssub.s32 %s18, %s27
    %s38 = sor.u32 %s36, %s37
    %s39 = ssub.s32 %s17, %s31
    %s40 = sor.u32 %s38, %s39
    %p41 = scmp.eq.s32.totalorder %s40, 0
    %s43 = sadd.s32 %s42, 1
    %s44 = scalar_select %p41, %s42, %s43
    %p47 = pneg %p41
    %p48 = scmp.eq.s32.totalorder %s9, 1
    %p49 = por %p47, %p48
    %p50 = scmp.ne.s32.totalorder %s42, %s45
    %p51 = scmp.eq.s32.totalorder %s9, 0
    %p52 = por %p50, %p51
    %p53 = scmp.ne.s32.totalorder %s42, %s45
    %p54 = scmp.eq.s32.totalorder %s14, 1
    %p55 = por %p53, %p54
    %p56 = scmp.ne.s32.totalorder %s45, %s46
    %p57 = scmp.eq.s32.totalorder %s14, 0
    %p58 = por %p56, %p57
    %p59 = scmp.ne.s32.totalorder %s45, %s46
    %p60 = scmp.eq.s32.totalorder %s15, 1
    %p61 = por %p59, %p60
    %p63 = scmp.ne.s32.totalorder %s46, %s62
    %p64 = scmp.eq.s32.totalorder %s15, 0
    %p65 = por %p63, %p64
    %s66 = ssub.s32 %s16, %s35
    %s67 = ssub.s32 %s17, %s31
    %s68 = sor.u32 %s66, %s67
    %p69 = scmp.eq.s32.totalorder %s68, 0
    %s71 = sadd.s32 %s70, 1
    %s72 = scalar_select %p69, %s70, %s71
    %p75 = pneg %p69
    %p76 = scmp.eq.s32.totalorder %s9, 1
    %p77 = por %p75, %p76
    %p78 = scmp.ne.s32.totalorder %s70, %s73
    %p79 = scmp.eq.s32.totalorder %s9, 0
    %p80 = por %p78, %p79
    %p81 = scmp.ne.s32.totalorder %s70, %s73
    %p82 = scmp.eq.s32.totalorder %s14, 1
    %p83 = por %p81, %p82
    %p84 = scmp.ne.s32.totalorder %s73, %s74
    %p85 = scmp.eq.s32.totalorder %s14, 0
    %p86 = por %p84, %p85
    %p87 = scmp.ne.s32.totalorder %s73, %s74
    %p88 = scmp.eq.s32.totalorder %s15, 1
    %p89 = por %p87, %p88
    %p91 = scmp.ne.s32.totalorder %s74, %s90
    %p92 = scmp.eq.s32.totalorder %s15, 0
    %p93 = por %p91, %p92
    %s94 = ssub.s32 %s16, %s35
    %s95 = ssub.s32 %s17, %s31
    %s96 = sor.u32 %s94, %s95
    %p97 = scmp.eq.s32.totalorder %s96, 0
    %s99 = sadd.s32 %s98, 1
    %s100 = scalar_select %p97, %s98, %s99
    %p103 = pneg %p97
    %p104 = scmp.eq.s32.totalorder %s9, 1
    %p105 = por %p103, %p104
    %p106 = scmp.ne.s32.totalorder %s98, %s101
    %p107 = scmp.eq.s32.totalorder %s9, 0
    %p108 = por %p106, %p107
    %p109 = scmp.ne.s32.totalorder %s98, %s101
    %p110 = scmp.eq.s32.totalorder %s14, 1
    %p111 = por %p109, %p110
    %p112 = scmp.ne.s32.totalorder %s101, %s102
    %p113 = scmp.eq.s32.totalorder %s14, 0
    %p114 = por %p112, %p113
    %p115 = scmp.ne.s32.totalorder %s101, %s102
    %p116 = scmp.eq.s32.totalorder %s15, 1
    %p117 = por %p115, %p116
    %p119 = scmp.ne.s32.totalorder %s102, %s118
    %p120 = scmp.eq.s32.totalorder %s15, 0
    %p121 = por %p119, %p120
    %s122 = ssub.s32 %s16, %s35
    %s123 = ssub.s32 %s18, %s27
    %s124 = sor.u32 %s122, %s123
    %s125 = ssub.s32 %s17, %s31
    %s126 = sor.u32 %s124, %s125
    %p127 = scmp.eq.s32.totalorder %s126, 0
    %s129 = sadd.s32 %s128, 1
    %s130 = scalar_select %p127, %s128, %s129
    %p133 = pneg %p127
    %p134 = scmp.eq.s32.totalorder %s9, 1
    %p135 = por %p133, %p134
    %p136 = scmp.ne.s32.totalorder %s128, %s131
    %p137 = scmp.eq.s32.totalorder %s9, 0
    %p138 = por %p136, %p137
    %p139 = scmp.ne.s32.totalorder %s128, %s131
    %p140 = scmp.eq.s32.totalorder %s14, 1
    %p141 = por %p139, %p140
    %p142 = scmp.ne.s32.totalorder %s131, %s132
    %p143 = scmp.eq.s32.totalorder %s14, 0
    %p144 = por %p142, %p143
    %p145 = scmp.ne.s32.totalorder %s131, %s132
    %p146 = scmp.eq.s32.totalorder %s15, 1
    %p147 = por %p145, %p146
    %p149 = scmp.ne.s32.totalorder %s132, %s148
    %p150 = scmp.eq.s32.totalorder %s15, 0
    %p151 = por %p149, %p150
    %p152 = scmp.le.s32.totalorder 1, %s9
    %p153 = scmp.lt.s32.totalorder %s9, 3
    %p154 = pnand %p152, %p153
    %p155 = pneg %p154
    // Predicated region
    $region9: #{conv_block_forward.5} parent=5 // pred_check
      _
    $region10: #{conv_block_forward.5} parent=5 // pred_check_branch
      %157 = sbr.rel (%p154) target = $region12
    $region11: #{conv_block_forward.5} parent=5 // pred_region
      %s158 = ssub.s32 %s9, 1
    $region12: #{conv_block_forward.5} parent=5 // pred_fallthru
      _
    %p159 = scmp.lt.s32.totalorder %s9, 2
    // Predicated region
    $region13: #{conv_block_forward.5} parent=5 // pred_check
      %p160 = pneg %p159
    $region14: #{conv_block_forward.5} parent=5 // pred_check_branch
      %162 = sbr.rel (%p160) target = $region16
    $region15: #{conv_block_forward.5} parent=5 // pred_region
      // Predicated region
      $region17: #{conv_block_forward.5} parent=15 // pred_check
        %p163 = pneg %p52
      $region18: #{conv_block_forward.5} parent=15 // pred_check_branch
        %165 = sbr.rel (%p163) target = $region20
      $region19: #{conv_block_forward.5} parent=15 // pred_region
        %s166 = smul.u32 16, %s18
        %p167 = scmp.lt.s32.totalorder %s16, 1
        %s168 = scalar_select %p167, %s16, 1
        %p169 = scmp.lt.s32.totalorder %s166, 15
        %s170 = scalar_select %p169, %s166, 15
        %p171 = scmp.lt.s32.totalorder %s17, 0
        %s172 = scalar_select %p171, %s17, 0
        %s173 = smul.addr %s170, 2
        %s174 = sadd.s32 %s172, %s173
        %s175 = smul.addr %s168, 32
        %s176 = sadd.s32 %s174, %s175
        %s177 = smul.addr %s176, 4
        %s178 = scalar_lea.vmem %s0, %s177
        %s179 = smul.u32 16, %s18
      $region20: #{conv_block_forward.5} parent=15 // pred_fallthru
        _
      // Predicated region
      $region21: #{conv_block_forward.5} parent=15 // pred_check
        %p180 = pneg %p80
      $region22: #{conv_block_forward.5} parent=15 // pred_check_branch
        %182 = sbr.rel (%p180) target = $region24
      $region23: #{conv_block_forward.5} parent=15 // pred_region
        %p183 = scmp.lt.s32.totalorder %s16, 1
        %s184 = scalar_select %p183, %s16, 1
        %p185 = scmp.lt.s32.totalorder %s17, 0
        %s186 = scalar_select %p185, %s17, 0
        %s187 = sadd.s32 %s186, %s184
        %s188 = scalar_lea.vmem %s1, %s187
      $region24: #{conv_block_forward.5} parent=15 // pred_fallthru
        _
      // Predicated region
      $region25: #{conv_block_forward.5} parent=15 // pred_check
        %p189 = pneg %p108
      $region26: #{conv_block_forward.5} parent=15 // pred_check_branch
        %191 = sbr.rel (%p189) target = $region28
      $region27: #{conv_block_forward.5} parent=15 // pred_region
        %p192 = scmp.lt.s32.totalorder %s16, 1
        %s193 = scalar_select %p192, %s16, 1
        %p194 = scmp.lt.s32.totalorder %s17, 0
        %s195 = scalar_select %p194, %s17, 0
        %s196 = sadd.s32 %s195, %s193
        %s197 = scalar_lea.vmem %s2, %s196
      $region28: #{conv_block_forward.5} parent=15 // pred_fallthru
        _
    $region16: #{conv_block_forward.5} parent=5 // pred_fallthru
      _
    %p198 = scmp.le.s32.totalorder 1, %s9
    %p199 = scmp.lt.s32.totalorder %s9, 3
    %p200 = pnand %p198, %p199
    %p201 = pneg %p200
    // Predicated region
    $region29: #{conv_block_forward.5} parent=5 // pred_check
      _
    $region30: #{conv_block_forward.5} parent=5 // pred_check_branch
      %203 = sbr.rel (%p200) target = $region32
    $region31: #{conv_block_forward.5} parent=5 // pred_region
      %s204 = ssub.s32 %s9, 1
      %s205 = smul.u32 16, %s21
      %p206 = scmp.lt.s32.totalorder %s19, 1
      %s207 = scalar_select %p206, %s19, 1
      %p208 = scmp.lt.s32.totalorder %s205, 15
      %s209 = scalar_select %p208, %s205, 15
      %p210 = scmp.lt.s32.totalorder %s20, 0
      %s211 = scalar_select %p210, %s20, 0
      %s212 = smul.addr %s209, 2
      %s213 = sadd.s32 %s211, %s212
      %s214 = smul.addr %s207, 32
      %s215 = sadd.s32 %s213, %s214
      %s216 = smul.addr %s215, 4
      %s217 = scalar_lea.vmem %s0, %s216
      %p218 = pneg %p58
      %p219 = pneg %p55
      %p220 = scmp.lt.s32.totalorder %s19, 1
      %s221 = scalar_select %p220, %s19, 1
      %p222 = scmp.lt.s32.totalorder %s20, 0
      %s223 = scalar_select %p222, %s20, 0
      %s224 = sadd.s32 %s223, %s221
      %s225 = scalar_lea.vmem %s1, %s224
      %p226 = pneg %p86
      %p227 = pneg %p83
      %p228 = scmp.lt.s32.totalorder %s19, 1
      %s229 = scalar_select %p228, %s19, 1
      %p230 = scmp.lt.s32.totalorder %s20, 0
      %s231 = scalar_select %p230, %s20, 0
      %s232 = sadd.s32 %s231, %s229
      %s233 = scalar_lea.vmem %s2, %s232
      %p234 = pneg %p114
      %p235 = pneg %p111
      %p236 = pneg %p144
      %p237 = pneg %p141
      %s238 = smul.u32 16, %s21
      %p239 = scmp.lt.s32.totalorder %s19, 1
      %s240 = scalar_select %p239, %s19, 1
      %p241 = scmp.lt.s32.totalorder %s238, 15
      %s242 = scalar_select %p241, %s238, 15
      %p243 = scmp.lt.s32.totalorder %s20, 0
      %s244 = scalar_select %p243, %s20, 0
      %s245 = smul.addr %s242, 2
      %s246 = sadd.s32 %s244, %s245
      %s247 = smul.addr %s240, 32
      %s248 = sadd.s32 %s246, %s247
      %s249 = smul.addr %s248, 8
      %s250 = scalar_lea.vmem %s3, %s249
      %s251 = smul.u32 16, %s21
      %p252 = scmp.lt.s32.totalorder %s19, 1
      %s253 = scalar_select %p252, %s19, 1
      %p254 = scmp.lt.s32.totalorder %s251, 15
      %s255 = scalar_select %p254, %s251, 15
      %p256 = scmp.lt.s32.totalorder %s20, 0
      %s257 = scalar_select %p256, %s20, 0
      %s258 = smul.addr %s255, 2
      %s259 = sadd.s32 %s257, %s258
      %s260 = smul.addr %s253, 32
      %s261 = sadd.s32 %s259, %s260
      %s262 = smul.addr %s261, 4
      %s263 = scalar_lea.vmem %s0, %s262
      %s264 = smul.u32 16, %s21
      %p265 = scmp.lt.s32.totalorder %s19, 1
      %s266 = scalar_select %p265, %s19, 1
      %p267 = scmp.lt.s32.totalorder %s20, 0
      %s268 = scalar_select %p267, %s20, 0
      %s269 = sadd.s32 %s268, %s266
      %s270 = scalar_lea.vmem %s1, %s269
      %p271 = scmp.lt.s32.totalorder %s19, 1
      %s272 = scalar_select %p271, %s19, 1
      %p273 = scmp.lt.s32.totalorder %s20, 0
      %s274 = scalar_select %p273, %s20, 0
      %s275 = sadd.s32 %s274, %s272
      %s276 = scalar_lea.vmem %s2, %s275
      %s277 = smul.u32 16, %s21
      %p278 = scmp.lt.s32.totalorder %s19, 1
      %s279 = scalar_select %p278, %s19, 1
      %p280 = scmp.lt.s32.totalorder %s277, 15
      %s281 = scalar_select %p280, %s277, 15
      %p282 = scmp.lt.s32.totalorder %s20, 0
      %s283 = scalar_select %p282, %s20, 0
      %s284 = smul.addr %s281, 2
      %s285 = sadd.s32 %s283, %s284
      %s286 = smul.addr %s279, 32
      %s287 = sadd.s32 %s285, %s286
      %s288 = smul.addr %s287, 8
      %s289 = scalar_lea.vmem %s3, %s288
      %s290 = smul.u32 16, %s21
      %v291 = vld [vmem:[%s263] sm:$0xf]
      %v292 = vld [vmem:[%s263 + $0x4] sm:$0xf]
      %v293 = vld [vmem:[%s263 + $0x8] sm:$0xf]
      %v294 = vld [vmem:[%s263 + $0xc] sm:$0xf]
      %v295 = vld [vmem:[%s263 + $0x10] sm:$0xf]
      %v296 = vld [vmem:[%s263 + $0x14] sm:$0xf]
      %v297 = vld [vmem:[%s263 + $0x18] sm:$0xf]
      %v298 = vld [vmem:[%s263 + $0x1c] sm:$0xf]
      %v299 = vld [vmem:[%s263 + $0x20] sm:$0xf]
      %v300 = vld [vmem:[%s263 + $0x24] sm:$0xf]
      %v301 = vld [vmem:[%s263 + $0x28] sm:$0xf]
      %v302 = vld [vmem:[%s263 + $0x2c] sm:$0xf]
      %v303 = vld [vmem:[%s263 + $0x30] sm:$0xf]
      %v304 = vld [vmem:[%s263 + $0x34] sm:$0xf]
      %v305 = vld [vmem:[%s263 + $0x38] sm:$0xf]
      %v306 = vld [vmem:[%s263 + $0x3c] sm:$0xf]
      %v307 = vld [vmem:[%s263 + $0x40] sm:$0xf]
      %v308 = vld [vmem:[%s263 + $0x44] sm:$0xf]
      %v309 = vld [vmem:[%s263 + $0x48] sm:$0xf]
      %v310 = vld [vmem:[%s263 + $0x4c] sm:$0xf]
      %v311 = vld [vmem:[%s263 + $0x50] sm:$0xf]
      %v312 = vld [vmem:[%s263 + $0x54] sm:$0xf]
      %v313 = vld [vmem:[%s263 + $0x58] sm:$0xf]
      %v314 = vld [vmem:[%s263 + $0x5c] sm:$0xf]
      %v315 = vld [vmem:[%s263 + $0x60] sm:$0xf]
      %v316 = vld [vmem:[%s263 + $0x64] sm:$0xf]
      %v317 = vld [vmem:[%s263 + $0x68] sm:$0xf]
      %v318 = vld [vmem:[%s263 + $0x6c] sm:$0xf]
      %v319 = vld [vmem:[%s263 + $0x70] sm:$0xf]
      %v320 = vld [vmem:[%s263 + $0x74] sm:$0xf]
      %v321 = vld [vmem:[%s263 + $0x78] sm:$0xf]
      %v322 = vld [vmem:[%s263 + $0x7c] sm:$0xf]
      %v323 = vunpack.c.l.bf16 %v291
      %v324 = vunpack.c.l.bf16 %v292
      %v325 = vunpack.c.l.bf16 %v293
      %v326 = vunpack.c.l.bf16 %v294
      %v327 = vunpack.c.l.bf16 %v295
      %v328 = vunpack.c.l.bf16 %v296
      %v329 = vunpack.c.l.bf16 %v297
      %v330 = vunpack.c.l.bf16 %v298
      %v331 = vunpack.c.l.bf16 %v299
      %v332 = vunpack.c.l.bf16 %v300
      %v333 = vunpack.c.l.bf16 %v301
      %v334 = vunpack.c.l.bf16 %v302
      %v335 = vunpack.c.l.bf16 %v303
      %v336 = vunpack.c.l.bf16 %v304
      %v337 = vunpack.c.l.bf16 %v305
      %v338 = vunpack.c.l.bf16 %v306
      %v339 = vunpack.c.l.bf16 %v307
      %v340 = vunpack.c.l.bf16 %v308
      %v341 = vunpack.c.l.bf16 %v309
      %v342 = vunpack.c.l.bf16 %v310
      %v343 = vunpack.c.l.bf16 %v311
      %v344 = vunpack.c.l.bf16 %v312
      %v345 = vunpack.c.l.bf16 %v313
      %v346 = vunpack.c.l.bf16 %v314
      %v347 = vunpack.c.l.bf16 %v315
      %v348 = vunpack.c.l.bf16 %v316
      %v349 = vunpack.c.l.bf16 %v317
      %v350 = vunpack.c.l.bf16 %v318
      %v351 = vunpack.c.l.bf16 %v319
      %v352 = vunpack.c.l.bf16 %v320
      %v353 = vunpack.c.l.bf16 %v321
      %v354 = vunpack.c.l.bf16 %v322
      %v355 = vld [vmem:[%s270] sm:$0x1]
      %v356 = vld [vmem:[%s276] sm:$0x1]
      %v358 = vperm.slane %v355, 0
      %v360 = vmul.f32 %v323, %v358
      %v361 = vmul.f32 %v324, %v358
      %v362 = vmul.f32 %v325, %v358
      %v363 = vmul.f32 %v326, %v358
      %v364 = vmul.f32 %v327, %v358
      %v365 = vmul.f32 %v328, %v358
      %v366 = vmul.f32 %v329, %v358
      %v367 = vmul.f32 %v330, %v358
      %v368 = vmul.f32 %v331, %v358
      %v369 = vmul.f32 %v332, %v358
      %v370 = vmul.f32 %v333, %v358
      %v371 = vmul.f32 %v334, %v358
      %v372 = vmul.f32 %v335, %v358
      %v373 = vmul.f32 %v336, %v358
      %v374 = vmul.f32 %v337, %v358
      %v375 = vmul.f32 %v338, %v358
      %v376 = vmul.f32 %v339, %v358
      %v377 = vmul.f32 %v340, %v358
      %v378 = vmul.f32 %v341, %v358
      %v379 = vmul.f32 %v342, %v358
      %v380 = vmul.f32 %v343, %v358
      %v381 = vmul.f32 %v344, %v358
      %v382 = vmul.f32 %v345, %v358
      %v383 = vmul.f32 %v346, %v358
      %v384 = vmul.f32 %v347, %v358
      %v385 = vmul.f32 %v348, %v358
      %v386 = vmul.f32 %v349, %v358
      %v387 = vmul.f32 %v350, %v358
      %v388 = vmul.f32 %v351, %v358
      %v389 = vmul.f32 %v352, %v358
      %v390 = vmul.f32 %v353, %v358
      %v391 = vmul.f32 %v354, %v358
      %v393 = vperm.slane %v356, 0
      %v395 = vadd.f32 %v360, %v393
      %v396 = vadd.f32 %v361, %v393
      %v397 = vadd.f32 %v362, %v393
      %v398 = vadd.f32 %v363, %v393
      %v399 = vadd.f32 %v364, %v393
      %v400 = vadd.f32 %v365, %v393
      %v401 = vadd.f32 %v366, %v393
      %v402 = vadd.f32 %v367, %v393
      %v403 = vadd.f32 %v368, %v393
      %v404 = vadd.f32 %v369, %v393
      %v405 = vadd.f32 %v370, %v393
      %v406 = vadd.f32 %v371, %v393
      %v407 = vadd.f32 %v372, %v393
      %v408 = vadd.f32 %v373, %v393
      %v409 = vadd.f32 %v374, %v393
      %v410 = vadd.f32 %v375, %v393
      %v411 = vadd.f32 %v376, %v393
      %v412 = vadd.f32 %v377, %v393
      %v413 = vadd.f32 %v378, %v393
      %v414 = vadd.f32 %v379, %v393
      %v415 = vadd.f32 %v380, %v393
      %v416 = vadd.f32 %v381, %v393
      %v417 = vadd.f32 %v382, %v393
      %v418 = vadd.f32 %v383, %v393
      %v419 = vadd.f32 %v384, %v393
      %v420 = vadd.f32 %v385, %v393
      %v421 = vadd.f32 %v386, %v393
      %v422 = vadd.f32 %v387, %v393
      %v423 = vadd.f32 %v388, %v393
      %v424 = vadd.f32 %v389, %v393
      %v425 = vadd.f32 %v390, %v393
      %v426 = vadd.f32 %v391, %v393
      %v427 = vmax.f32 %v395, 0.0
      %v428 = vmax.f32 %v396, 0.0
      %v429 = vmax.f32 %v397, 0.0
      %v430 = vmax.f32 %v398, 0.0
      %v431 = vmax.f32 %v399, 0.0
      %v432 = vmax.f32 %v400, 0.0
      %v433 = vmax.f32 %v401, 0.0
      %v434 = vmax.f32 %v402, 0.0
      %v435 = vmax.f32 %v403, 0.0
      %v436 = vmax.f32 %v404, 0.0
      %v437 = vmax.f32 %v405, 0.0
      %v438 = vmax.f32 %v406, 0.0
      %v439 = vmax.f32 %v407, 0.0
      %v440 = vmax.f32 %v408, 0.0
      %v441 = vmax.f32 %v409, 0.0
      %v442 = vmax.f32 %v410, 0.0
      %v443 = vmax.f32 %v411, 0.0
      %v444 = vmax.f32 %v412, 0.0
      %v445 = vmax.f32 %v413, 0.0
      %v446 = vmax.f32 %v414, 0.0
      %v447 = vmax.f32 %v415, 0.0
      %v448 = vmax.f32 %v416, 0.0
      %v449 = vmax.f32 %v417, 0.0
      %v450 = vmax.f32 %v418, 0.0
      %v451 = vmax.f32 %v419, 0.0
      %v452 = vmax.f32 %v420, 0.0
      %v453 = vmax.f32 %v421, 0.0
      %v454 = vmax.f32 %v422, 0.0
      %v455 = vmax.f32 %v423, 0.0
      %v456 = vmax.f32 %v424, 0.0
      %v457 = vmax.f32 %v425, 0.0
      %v458 = vmax.f32 %v426, 0.0
      %459 = vst [vmem:[%s289] sm:$0xff] %v427
      %460 = vst [vmem:[%s289 + $0x8] sm:$0xff] %v428
      %461 = vst [vmem:[%s289 + $0x10] sm:$0xff] %v429
      %462 = vst [vmem:[%s289 + $0x18] sm:$0xff] %v430
      %463 = vst [vmem:[%s289 + $0x20] sm:$0xff] %v431
      %464 = vst [vmem:[%s289 + $0x28] sm:$0xff] %v432
      %465 = vst [vmem:[%s289 + $0x30] sm:$0xff] %v433
      %466 = vst [vmem:[%s289 + $0x38] sm:$0xff] %v434
      %467 = vst [vmem:[%s289 + $0x40] sm:$0xff] %v435
      %468 = vst [vmem:[%s289 + $0x48] sm:$0xff] %v436
      %469 = vst [vmem:[%s289 + $0x50] sm:$0xff] %v437
      %470 = vst [vmem:[%s289 + $0x58] sm:$0xff] %v438
      %471 = vst [vmem:[%s289 + $0x60] sm:$0xff] %v439
      %472 = vst [vmem:[%s289 + $0x68] sm:$0xff] %v440
      %473 = vst [vmem:[%s289 + $0x70] sm:$0xff] %v441
      %474 = vst [vmem:[%s289 + $0x78] sm:$0xff] %v442
      %475 = vst [vmem:[%s289 + $0x80] sm:$0xff] %v443
      %476 = vst [vmem:[%s289 + $0x88] sm:$0xff] %v444
      %477 = vst [vmem:[%s289 + $0x90] sm:$0xff] %v445
      %478 = vst [vmem:[%s289 + $0x98] sm:$0xff] %v446
      %479 = vst [vmem:[%s289 + $0xa0] sm:$0xff] %v447
      %480 = vst [vmem:[%s289 + $0xa8] sm:$0xff] %v448
      %481 = vst [vmem:[%s289 + $0xb0] sm:$0xff] %v449
      %482 = vst [vmem:[%s289 + $0xb8] sm:$0xff] %v450
      %483 = vst [vmem:[%s289 + $0xc0] sm:$0xff] %v451
      %484 = vst [vmem:[%s289 + $0xc8] sm:$0xff] %v452
      %485 = vst [vmem:[%s289 + $0xd0] sm:$0xff] %v453
      %486 = vst [vmem:[%s289 + $0xd8] sm:$0xff] %v454
      %487 = vst [vmem:[%s289 + $0xe0] sm:$0xff] %v455
      %488 = vst [vmem:[%s289 + $0xe8] sm:$0xff] %v456
      %489 = vst [vmem:[%s289 + $0xf0] sm:$0xff] %v457
      %490 = vst [vmem:[%s289 + $0xf8] sm:$0xff] %v458
      %s491 = smul.u32 16, %s21
      %p492 = scmp.lt.s32.totalorder %s19, 1
      %s493 = scalar_select %p492, %s19, 1
      %p494 = scmp.lt.s32.totalorder %s491, 15
      %s495 = scalar_select %p494, %s491, 15
      %p496 = scmp.lt.s32.totalorder %s20, 0
      %s497 = scalar_select %p496, %s20, 0
      %s498 = smul.addr %s495, 2
      %s499 = sadd.s32 %s497, %s498
      %s500 = smul.addr %s493, 32
      %s501 = sadd.s32 %s499, %s500
      %s502 = smul.addr %s501, 8
      %s503 = scalar_lea.vmem %s3, %s502
      // Predicated region
      $region33: #{conv_block_forward.5} parent=31 // pred_check
        %p504 = pneg %p141
      $region34: #{conv_block_forward.5} parent=31 // pred_check_branch
        %506 = sbr.rel (%p504) target = $region36
      $region35: #{conv_block_forward.5} parent=31 // pred_region
        %s507 = smul.u32 16, %s21
      $region36: #{conv_block_forward.5} parent=31 // pred_fallthru
        _
    $region32: #{conv_block_forward.5} parent=5 // pred_fallthru
      _
    %p508 = scmp.le.s32.totalorder 2, %s9
    // Predicated region
    $region37: #{conv_block_forward.5} parent=5 // pred_check
      %p509 = pneg %p508
    $region38: #{conv_block_forward.5} parent=5 // pred_check_branch
      %511 = sbr.rel (%p509) target = $region40
    $region39: #{conv_block_forward.5} parent=5 // pred_region
      %s512 = ssub.s32 %s9, 2
      // Predicated region
      $region41: #{conv_block_forward.5} parent=39 // pred_check
        %p513 = pneg %p147
      $region42: #{conv_block_forward.5} parent=39 // pred_check_branch
        %515 = sbr.rel (%p513) target = $region44
      $region43: #{conv_block_forward.5} parent=39 // pred_region
        %s516 = smul.u32 16, %s24
        %p517 = scmp.lt.s32.totalorder %s22, 1
        %s518 = scalar_select %p517, %s22, 1
        %p519 = scmp.lt.s32.totalorder %s516, 15
        %s520 = scalar_select %p519, %s516, 15
        %p521 = scmp.lt.s32.totalorder %s23, 0
        %s522 = scalar_select %p521, %s23, 0
        %s523 = smul.addr %s520, 2
        %s524 = sadd.s32 %s522, %s523
        %s525 = smul.addr %s518, 32
        %s526 = sadd.s32 %s524, %s525
        %s527 = smul.addr %s526, 8
        %s528 = scalar_lea.vmem %s3, %s527
      $region44: #{conv_block_forward.5} parent=39 // pred_fallthru
        _
    $region40: #{conv_block_forward.5} parent=5 // pred_fallthru
      _
  $region6: #{conv_block_forward.5} parent=0 // loop_footer
    %s13 = sadd.s32 1, %s9
  $region7: #{conv_block_forward.5} parent=0 // loop_footer_branch
    %8 = sbr.rel target = $region3
  $region8: #{conv_block_forward.5} parent=0 // loop_exit
    _

// kernel: conv_block_forward.3
$region0: #{conv_block_forward.3}
  #allocation0 [shape = 'u32[]', space=smem, size = 0x4, offset = 0x4, fixed_abs, tag = 'smem constant byte address 0x4 - core index']
  #allocation1 [shape = 'u32[72,128]{1,0:T(1,128)}', space=vmem, size = 0x9000, scoped, tag = 'internal scratch']
  #allocation2 [shape = 'f32[16,128]{1,0:T(8,128)}', space=vmem, size = 0x2000, scoped, tag = 'scratch operand']
  %s0 = inlined_call_operand.vmem [shape: bf16[2,18,18,4], index: 0, kind: input, shape index: {}]
  %s1 = inlined_call_operand.vmem [shape: bf16[3,3,4,128], index: 1, kind: input, shape index: {}]
  %s2 = inlined_call_operand.vmem [shape: f32[1,128], index: 2, kind: input, shape index: {}]
  %s3 = inlined_call_operand.vmem [shape: bf16[2,16,16,128], index: 3, kind: output, shape index: {}]
  %s4 = sld [smem:[#allocation0]]
  $region53: #{conv_block_forward.3} parent=0
    _
  %s6 = ssub.s32 1, %s4
  %s7 = scalar_select 0, %s6, %s4
  loop: start=0, step=1, limit=98
  $region2: #{conv_block_forward.3} parent=0 // loop_pre_header
    _
  $region3: #{conv_block_forward.3} parent=0 // loop_header
    %s9 = sphi 0, %s13
    %p10 = scmp.ge.s32.totalorder %s9, 98
    %s16 = sphi 0, %s35
    %s17 = sphi 0, %s31
    %s18 = sphi 0, %s27
    %s19 = sphi 0, %s16
    %s20 = sphi 0, %s17
    %s21 = sphi 0, %s18
    %s22 = sphi 0, %s19
    %s23 = sphi 0, %s20
    %s24 = sphi 0, %s21
    %s42 = sphi 0, %s44
    %s45 = sphi 0, %s42
    %s46 = sphi 0, %s45
    %s62 = sphi 0, %s46
    %s66 = sphi 0, %s66
    %s68 = sphi 0, %s66
    %s69 = sphi 0, %s68
    %s83 = sphi 0, %s69
    %s87 = sphi 0, %s87
    %s89 = sphi 0, %s87
    %s90 = sphi 0, %s89
    %s104 = sphi 0, %s90
    %s112 = sphi 0, %s114
    %s115 = sphi 0, %s112
    %s116 = sphi 0, %s115
    %s132 = sphi 0, %s116
  $region4: #{conv_block_forward.3} parent=0 // loop_header_branch
    %12 = sbr.rel (%p10) target = $region8
  $region5: #{conv_block_forward.3} parent=0 // loop_body
    %s14 = ssub.s32 %s9, 1
    %s15 = ssub.s32 %s9, 2
    %s25 = sadd.s32 1, %s18
    %p26 = scmp.ge.s32.totalorder %s25, 3
    %s27 = scalar_select %p26, 0, %s25
    %s28 = sadd.s32 1, %s17
    %s29 = scalar_select %p26, %s28, %s17
    %p30 = scmp.ge.s32.totalorder %s29, 16
    %s31 = scalar_select %p30, 0, %s29
    %s32 = sadd.s32 1, %s16
    %s33 = scalar_select %p30, %s32, %s16
    %p34 = scmp.ge.s32.totalorder %s33, 2
    %s35 = scalar_select %p34, 0, %s33
    %s36 = sadd.s32 %s17, %s18
    %s37 = sadd.s32 %s31, %s27
    %s38 = ssub.s32 %s16, %s35
    %s39 = ssub.s32 %s36, %s37
    %s40 = sor.u32 %s38, %s39
    %p41 = scmp.eq.s32.totalorder %s40, 0
    %s43 = sadd.s32 %s42, 1
    %s44 = scalar_select %p41, %s42, %s43
    %p47 = pneg %p41
    %p48 = scmp.eq.s32.totalorder %s9, 95
    %p49 = por %p47, %p48
    %p50 = scmp.ne.s32.totalorder %s42, %s45
    %p51 = scmp.eq.s32.totalorder %s9, 0
    %p52 = por %p50, %p51
    %p53 = scmp.ne.s32.totalorder %s42, %s45
    %p54 = scmp.eq.s32.totalorder %s14, 95
    %p55 = por %p53, %p54
    %p56 = scmp.ne.s32.totalorder %s45, %s46
    %p57 = scmp.eq.s32.totalorder %s14, 0
    %p58 = por %p56, %p57
    %p59 = scmp.ne.s32.totalorder %s45, %s46
    %p60 = scmp.eq.s32.totalorder %s15, 95
    %p61 = por %p59, %p60
    %p63 = scmp.ne.s32.totalorder %s46, %s62
    %p64 = scmp.eq.s32.totalorder %s15, 0
    %p65 = por %p63, %p64
    %s67 = sadd.s32 %s66, 1
    %p70 = scmp.eq.s32.totalorder %s9, 95
    %p71 = scmp.ne.s32.totalorder %s66, %s68
    %p72 = scmp.eq.s32.totalorder %s9, 0
    %p73 = por %p71, %p72
    %p74 = scmp.ne.s32.totalorder %s66, %s68
    %p75 = scmp.eq.s32.totalorder %s14, 95
    %p76 = por %p74, %p75
    %p77 = scmp.ne.s32.totalorder %s68, %s69
    %p78 = scmp.eq.s32.totalorder %s14, 0
    %p79 = por %p77, %p78
    %p80 = scmp.ne.s32.totalorder %s68, %s69
    %p81 = scmp.eq.s32.totalorder %s15, 95
    %p82 = por %p80, %p81
    %p84 = scmp.ne.s32.totalorder %s69, %s83
    %p85 = scmp.eq.s32.totalorder %s15, 0
    %p86 = por %p84, %p85
    %s88 = sadd.s32 %s87, 1
    %p91 = scmp.eq.s32.totalorder %s9, 95
    %p92 = scmp.ne.s32.totalorder %s87, %s89
    %p93 = scmp.eq.s32.totalorder %s9, 0
    %p94 = por %p92, %p93
    %p95 = scmp.ne.s32.totalorder %s87, %s89
    %p96 = scmp.eq.s32.totalorder %s14, 95
    %p97 = por %p95, %p96
    %p98 = scmp.ne.s32.totalorder %s89, %s90
    %p99 = scmp.eq.s32.totalorder %s14, 0
    %p100 = por %p98, %p99
    %p101 = scmp.ne.s32.totalorder %s89, %s90
    %p102 = scmp.eq.s32.totalorder %s15, 95
    %p103 = por %p101, %p102
    %p105 = scmp.ne.s32.totalorder %s90, %s104
    %p106 = scmp.eq.s32.totalorder %s15, 0
    %p107 = por %p105, %p106
    %s108 = ssub.s32 %s16, %s35
    %s109 = ssub.s32 %s17, %s31
    %s110 = sor.u32 %s108, %s109
    %p111 = scmp.eq.s32.totalorder %s110, 0
    %s113 = sadd.s32 %s112, 1
    %s114 = scalar_select %p111, %s112, %s113
    %p117 = pneg %p111
    %p118 = scmp.eq.s32.totalorder %s9, 95
    %p119 = por %p117, %p118
    %p120 = scmp.ne.s32.totalorder %s112, %s115
    %p121 = scmp.eq.s32.totalorder %s9, 0
    %p122 = por %p120, %p121
    %p123 = scmp.ne.s32.totalorder %s112, %s115
    %p124 = scmp.eq.s32.totalorder %s14, 95
    %p125 = por %p123, %p124
    %p126 = scmp.ne.s32.totalorder %s115, %s116
    %p127 = scmp.eq.s32.totalorder %s14, 0
    %p128 = por %p126, %p127
    %p129 = scmp.ne.s32.totalorder %s115, %s116
    %p130 = scmp.eq.s32.totalorder %s15, 95
    %p131 = por %p129, %p130
    %p133 = scmp.ne.s32.totalorder %s116, %s132
    %p134 = scmp.eq.s32.totalorder %s15, 0
    %p135 = por %p133, %p134
    %p136 = scmp.le.s32.totalorder 1, %s9
    %p137 = scmp.lt.s32.totalorder %s9, 97
    %p138 = pnand %p136, %p137
    %p139 = pneg %p138
    // Predicated region
    $region9: #{conv_block_forward.3} parent=5 // pred_check
      _
    $region10: #{conv_block_forward.3} parent=5 // pred_check_branch
      %141 = sbr.rel (%p138) target = $region12
    $region11: #{conv_block_forward.3} parent=5 // pred_region
      %s142 = ssub.s32 %s9, 1
      // Predicated region
      $region13: #{conv_block_forward.3} parent=11 // pred_check
        %p143 = pneg %p79
      $region14: #{conv_block_forward.3} parent=11 // pred_check_branch
        %145 = sbr.rel (%p143) target = $region16
      $region15: #{conv_block_forward.3} parent=11 // pred_region
        _
      $region16: #{conv_block_forward.3} parent=11 // pred_fallthru
        _
      // Predicated region
      $region17: #{conv_block_forward.3} parent=11 // pred_check
        %p146 = pneg %p100
      $region18: #{conv_block_forward.3} parent=11 // pred_check_branch
        %148 = sbr.rel (%p146) target = $region20
      $region19: #{conv_block_forward.3} parent=11 // pred_region
        _
      $region20: #{conv_block_forward.3} parent=11 // pred_fallthru
        _
    $region12: #{conv_block_forward.3} parent=5 // pred_fallthru
      _
    %p149 = scmp.lt.s32.totalorder %s9, 96
    // Predicated region
    $region21: #{conv_block_forward.3} parent=5 // pred_check
      %p150 = pneg %p149
    $region22: #{conv_block_forward.3} parent=5 // pred_check_branch
      %152 = sbr.rel (%p150) target = $region24
    $region23: #{conv_block_forward.3} parent=5 // pred_region
      // Predicated region
      $region25: #{conv_block_forward.3} parent=23 // pred_check
        %p153 = pneg %p52
      $region26: #{conv_block_forward.3} parent=23 // pred_check_branch
        %155 = sbr.rel (%p153) target = $region28
      $region27: #{conv_block_forward.3} parent=23 // pred_region
        %s156 = sadd.s32 %s17, %s18
        %p157 = scmp.lt.s32.totalorder %s16, 1
        %s158 = scalar_select %p157, %s16, 1
        %p159 = scmp.lt.s32.totalorder %s156, 17
        %s160 = scalar_select %p159, %s156, 17
        %s161 = smul.addr %s160, 3
        %s162 = smul.addr %s158, 54
        %s163 = sadd.s32 %s161, %s162
        %s164 = smul.addr %s163, 4
        %s165 = scalar_lea.vmem %s0, %s164
        %s166 = sadd.s32 %s17, %s18
      $region28: #{conv_block_forward.3} parent=23 // pred_fallthru
        _
    $region24: #{conv_block_forward.3} parent=5 // pred_fallthru
      _
    %p167 = scmp.le.s32.totalorder 1, %s9
    %p168 = scmp.lt.s32.totalorder %s9, 97
    %p169 = pnand %p167, %p168
    %p170 = pneg %p169
    // Predicated region
    $region29: #{conv_block_forward.3} parent=5 // pred_check
      _
    $region30: #{conv_block_forward.3} parent=5 // pred_check_branch
      %172 = sbr.rel (%p169) target = $region32
    $region31: #{conv_block_forward.3} parent=5 // pred_region
      %s173 = ssub.s32 %s9, 1
      %s174 = sadd.s32 %s20, %s21
      %p175 = scmp.lt.s32.totalorder %s19, 1
      %s176 = scalar_select %p175, %s19, 1
      %p177 = scmp.lt.s32.totalorder %s174, 17
      %s178 = scalar_select %p177, %s174, 17
      %s179 = smul.addr %s178, 3
      %s180 = smul.addr %s176, 54
      %s181 = sadd.s32 %s179, %s180
      %s182 = smul.addr %s181, 4
      %s183 = scalar_lea.vmem %s0, %s182
      %p184 = pneg %p58
      %p185 = pneg %p55
      %p186 = pneg %p79
      %p187 = pneg %p76
      %p188 = pneg %p100
      %p189 = pneg %p97
      %p190 = pneg %p128
      %p191 = pneg %p125
      %p192 = scmp.lt.s32.totalorder %s19, 1
      %s193 = scalar_select %p192, %s19, 1
      %p194 = scmp.lt.s32.totalorder %s20, 15
      %s195 = scalar_select %p194, %s20, 15
      %s196 = smul.addr %s195, 2
      %s197 = smul.addr %s193, 32
      %s198 = sadd.s32 %s196, %s197
      %s199 = smul.addr %s198, 4
      %s200 = scalar_lea.vmem %s3, %s199
      %s201 = sadd.s32 %s20, %s21
      %p202 = scmp.lt.s32.totalorder %s19, 1
      %s203 = scalar_select %p202, %s19, 1
      %p204 = scmp.lt.s32.totalorder %s201, 17
      %s205 = scalar_select %p204, %s201, 17
      %s206 = smul.addr %s205, 3
      %s207 = smul.addr %s203, 54
      %s208 = sadd.s32 %s206, %s207
      %s209 = smul.addr %s208, 4
      %s210 = scalar_lea.vmem %s0, %s209
      %s211 = sadd.s32 %s20, %s21
      %p212 = scmp.lt.s32.totalorder %s19, 1
      %s213 = scalar_select %p212, %s19, 1
      %p214 = scmp.lt.s32.totalorder %s20, 15
      %s215 = scalar_select %p214, %s20, 15
      %s216 = smul.addr %s215, 2
      %s217 = smul.addr %s213, 32
      %s218 = sadd.s32 %s216, %s217
      %s219 = smul.addr %s218, 4
      %s220 = scalar_lea.vmem %s3, %s219
      %p222 = scmp.eq.s32.totalorder %s21, 0
      // Predicated region
      $region33: #{conv_block_forward.3} parent=31 // pred_check
        %p223 = pneg %p222
      $region34: #{conv_block_forward.3} parent=31 // pred_check_branch
        %225 = sbr.rel (%p223) target = $region36
      $region35: #{conv_block_forward.3} parent=31 // pred_region
        %226 = vst [vmem:[#allocation2] sm:$0xff] 0.0
        %227 = vst [vmem:[#allocation2 + $0x8] sm:$0xff] 0.0
      $region36: #{conv_block_forward.3} parent=31 // pred_fallthru
        _
      %v228 = vld [vmem:[%s210] sm:$0xf]
      %v229 = vld [vmem:[%s210 + $0x4] sm:$0xf]
      %v230 = vld [vmem:[%s210 + $0x8] sm:$0x1]
      %v231 = vld [vmem:[#allocation2] sm:$0xff]
      %v232 = vld [vmem:[#allocation2 + $0x8] sm:$0xff]
      %s233 = smul.u32 %s21, 3
      %s234 = smul.addr %s233, 2
      %s235 = scalar_lea.vmem %s1, %s234
      %v236 = vld [vmem:[%s235] sm:$0x3]
      %v239 = vunpack.c.l.b16 %v228
      %v240 = vunpack.c.l.b16 %v229
      %v241 = vpack.c.b16 %v240, %v239
      %vm242 = vcmask 31744
      %v244 = vsel %vm242, %v241, 0
      %vm246 = vcmask 1041408
      %v248 = vsel %vm246, %v236, 0
      %250 = vmatpush.bf16.msra.mxu0 0
      %251 = vmatpush.bf16.msra.mxu0 0
      %252 = vmatpush.bf16.msra.mxu0 0
      %253 = vmatpush.bf16.msra.mxu0 0
      %254 = vmatpush.bf16.msra.mxu0 0
      %255 = vmatpush.bf16.msra.mxu0 0
      %256 = vmatpush.bf16.msra.mxu0 0
      %257 = vmatpush.bf16.msra.mxu0 %v248
      %258 = vmatmul.bf16.gmra.mxu0 %v244
      %v259 = vpop.f32.mrf.mxu0
      %v260 = vadd.f32 0.0, %v259
      %v261 = vpop.f32.mrf.mxu0
      %v262 = vadd.f32 0.0, %v261
      %263 = vdwg.mxu0
      %v264 = vadd.f32 %v231, %v260
      %v265 = vadd.f32 %v232, %v262
      %s266 = sadd.s32 1, %s233
      %s267 = smul.addr %s266, 2
      %s268 = scalar_lea.vmem %s1, %s267
      %v269 = vld [vmem:[%s268] sm:$0x3]
      %v271 = vunpack.c.l.b16 %v230
      %v272 = vpack.c.b16 %v271, %v271
      %vm273 = vsmask.f32 7424
      %v274 = vshrl.u32 %v241, 16
      %v276 = vshll.u32 %v241, 16
      %v278 = vrot.slane %v276, 1
      %v279 = vor.u32 %v274, %v278
      %v281 = vshll.u32 %v272, 16
      %v283 = vrot.slane %v281, 1
      %v284 = vsel %vm273, %v279, %v283
      %v286 = vsel %vm242, %v284, 0
      %v289 = vsel %vm246, %v269, 0
      %291 = vmatpush.bf16.msra.mxu0 0
      %292 = vmatpush.bf16.msra.mxu0 0
      %293 = vmatpush.bf16.msra.mxu0 0
      %294 = vmatpush.bf16.msra.mxu0 0
      %295 = vmatpush.bf16.msra.mxu0 0
      %296 = vmatpush.bf16.msra.mxu0 0
      %297 = vmatpush.bf16.msra.mxu0 0
      %298 = vmatpush.bf16.msra.mxu0 %v289
      %299 = vmatmul.bf16.gmra.mxu0 %v286
      %v300 = vpop.f32.mrf.mxu0
      %v301 = vadd.f32 0.0, %v300
      %v302 = vpop.f32.mrf.mxu0
      %v303 = vadd.f32 0.0, %v302
      %304 = vdwg.mxu0
      %v305 = vadd.f32 %v264, %v301
      %v306 = vadd.f32 %v265, %v303
      %s307 = sadd.s32 2, %s233
      %s308 = smul.addr %s307, 2
      %s309 = scalar_lea.vmem %s1, %s308
      %v310 = vld [vmem:[%s309] sm:$0x3]
      %vm311 = vcmask 1046528
      %v312 = vrot.slane %v241, 1
      %v313 = vrot.slane %v272, 1
      %v314 = vsel %vm311, %v312, %v313
      %v316 = vsel %vm242, %v314, 0
      %v319 = vsel %vm246, %v310, 0
      %321 = vmatpush.bf16.msra.mxu0 0
      %322 = vmatpush.bf16.msra.mxu0 0
      %323 = vmatpush.bf16.msra.mxu0 0
      %324 = vmatpush.bf16.msra.mxu0 0
      %325 = vmatpush.bf16.msra.mxu0 0
      %326 = vmatpush.bf16.msra.mxu0 0
      %327 = vmatpush.bf16.msra.mxu0 0
      %328 = vmatpush.bf16.msra.mxu0 %v319
      %329 = vmatmul.bf16.gmra.mxu0 %v316
      %v330 = vpop.f32.mrf.mxu0
      %v331 = vadd.f32 0.0, %v330
      %v332 = vpop.f32.mrf.mxu0
      %v333 = vadd.f32 0.0, %v332
      %334 = vdwg.mxu0
      %v335 = vadd.f32 %v305, %v331
      %v336 = vadd.f32 %v306, %v333
      %337 = vst [vmem:[#allocation2] sm:$0xff] %v335
      %338 = vst [vmem:[#allocation2 + $0x8] sm:$0xff] %v336
      %p339 = scmp.eq.s32.totalorder %s21, 2
      // Predicated region
      $region37: #{conv_block_forward.3} parent=31 // pred_check
        %p340 = pneg %p339
      $region38: #{conv_block_forward.3} parent=31 // pred_check_branch
        %342 = sbr.rel (%p340) target = $region40
      $region39: #{conv_block_forward.3} parent=31 // pred_region
        %v343 = vld [vmem:[#allocation2] sm:$0xff]
        %v344 = vld [vmem:[#allocation2 + $0x8] sm:$0xff]
        %v345 = vld [vmem:[%s2] sm:$0x1]
        %v347 = vperm.slane %v345, 0
        %v349 = vadd.f32 %v343, %v347
        %v350 = vadd.f32 %v344, %v347
        %v351 = vpack.c.bf16 %v349, %v349
        %v352 = vpack.c.bf16 %v350, %v350
        %353 = vst [vmem:[%s220] sm:$0xf] %v351
        %354 = vst [vmem:[%s220 + $0x4] sm:$0xf] %v352
      $region40: #{conv_block_forward.3} parent=31 // pred_fallthru
        _
      %p355 = scmp.lt.s32.totalorder %s19, 1
      %s356 = scalar_select %p355, %s19, 1
      %p357 = scmp.lt.s32.totalorder %s20, 15
      %s358 = scalar_select %p357, %s20, 15
      %s359 = smul.addr %s358, 2
      %s360 = smul.addr %s356, 32
      %s361 = sadd.s32 %s359, %s360
      %s362 = smul.addr %s361, 4
      %s363 = scalar_lea.vmem %s3, %s362
      // Predicated region
      $region41: #{conv_block_forward.3} parent=31 // pred_check
        %p364 = pneg %p125
      $region42: #{conv_block_forward.3} parent=31 // pred_check_branch
        %366 = sbr.rel (%p364) target = $region44
      $region43: #{conv_block_forward.3} parent=31 // pred_region
        _
      $region44: #{conv_block_forward.3} parent=31 // pred_fallthru
        _
    $region32: #{conv_block_forward.3} parent=5 // pred_fallthru
      _
    %p367 = scmp.le.s32.totalorder 2, %s9
    // Predicated region
    $region45: #{conv_block_forward.3} parent=5 // pred_check
      %p368 = pneg %p367
    $region46: #{conv_block_forward.3} parent=5 // pred_check_branch
      %370 = sbr.rel (%p368) target = $region48
    $region47: #{conv_block_forward.3} parent=5 // pred_region
      %s371 = ssub.s32 %s9, 2
      // Predicated region
      $region49: #{conv_block_forward.3} parent=47 // pred_check
        %p372 = pneg %p131
      $region50: #{conv_block_forward.3} parent=47 // pred_check_branch
        %374 = sbr.rel (%p372) target = $region52
      $region51: #{conv_block_forward.3} parent=47 // pred_region
        %p375 = scmp.lt.s32.totalorder %s22, 1
        %s376 = scalar_select %p375, %s22, 1
        %p377 = scmp.lt.s32.totalorder %s23, 15
        %s378 = scalar_select %p377, %s23, 15
        %s379 = smul.addr %s378, 2
        %s380 = smul.addr %s376, 32
        %s381 = sadd.s32 %s379, %s380
        %s382 = smul.addr %s381, 4
        %s383 = scalar_lea.vmem %s3, %s382
      $region52: #{conv_block_forward.3} parent=47 // pred_fallthru
        _
    $region48: #{conv_block_forward.3} parent=5 // pred_fallthru
      _
  $region6: #{conv_block_forward.3} parent=0 // loop_footer
    %s13 = sadd.s32 1, %s9
  $region7: #{conv_block_forward.3} parent=0 // loop_footer_branch
    %8 = sbr.rel target = $region3
  $region8: #{conv_block_forward.3} parent=0 // loop_exit
    _

</llo_original>
